<compile_context>
chip_gen: v5e
topology: v5e:2x2
jax: 0.10.0
libtpu: 0.0.40
codegen_flags: <defaults>
</compile_context>

<pallas_src>
import jax
import jax.numpy as jnp
from jax.experimental import pallas as pl
from jax.experimental.pallas import tpu as pltpu

# ---------------- model hyperparameters (small, forward-consistent) ----------
B = 2                 # batch
SEQ_LEN = 8           # seq_len
EMB_DIM = 16          # embedding_dim
HIDDEN_DIM = 32       # hidden_dim
LATENT_DIM = 16       # latent_dim
FEATURE_DIM = 8       # feature_dim
VOCAB = 32            # chord_vocab_size
INPUT_DIM = 16        # stored by the module but unused in forward

H = HIDDEN_DIM
G = 4 * HIDDEN_DIM    # 128 gate lanes
LANES = 128

# ---------------- packed weight-slab layout (row offsets, multiples of 8) ----
R_ENC_LUT = 0         # (VOCAB, 4H) = (32, 128): emb[v] @ W_ih^T + b, g-cols x2
R_ENC_WHH = 32        # (H, 4H)  = (32, 128), g-cols x2
R_HEAD_W  = 64        # (H, 2L) padded to (32, 128)   [mu | logvar]
R_HEAD_B  = 96        # (1, 2L) padded
R_DEC_WIH = 104       # (L, 4H)  = (16, 128), g-cols x2
R_DEC_WHH = 120       # (H, 4H)  = (32, 128), g-cols x2
R_DEC_B   = 152       # (1, 4H), g-cols x2
R_REC_W   = 160       # (H, V) padded to (32, 128)
R_REC_B   = 192       # (1, V) padded
R_FEAT_W  = 200       # (L, F) padded to (16, 128)
R_FEAT_B  = 216       # (1, F) padded
W_ROWS    = 224


# ---------------------------- Pallas kernel ----------------------------------
def _lstm_cell(x_gates, h, c, w_hh):
    """One LSTM step with precomputed input-side gates.

    x_gates: (B, 4H) = x @ W_ih^T + b (bias folded in; g-columns pre-scaled x2)
    h, c   : (B, H)
    w_hh   : (H, 4H) with g-columns pre-scaled x2
    Only two EUP pushes per step: one sigmoid over the full gates vreg, and one
    sigmoid used to recover tanh(c_new) = 2*sigmoid(2*c_new) - 1.
    """
    gates = x_gates + jnp.dot(h, w_hh, preferred_element_type=jnp.float32)
    sg = jax.nn.sigmoid(gates)                       # (B, 4H), one EUP pass
    i_g = sg[:, 0 * H:1 * H]
    f_g = sg[:, 1 * H:2 * H]
    g_g = 2.0 * sg[:, 2 * H:3 * H] - 1.0             # == tanh(pre-activation)
    o_g = sg[:, 3 * H:4 * H]
    c_new = f_g * c + i_g * g_g
    h_new = o_g * (2.0 * jax.nn.sigmoid(2.0 * c_new) - 1.0)   # tanh via sigmoid
    return h_new, c_new


def guidance_vae_kernel(
    tok_ref,     # (B, S) int32 tokens in SMEM
    eps_ref,     # (B, L) f32 in VMEM
    w_ref,       # (W_ROWS, 128) packed weights/biases in VMEM
    recon_ref,   # (B, S, 128) lane-dense recon slab (lanes 0:V valid)
    small_ref,   # (B, 128)   [z | mu | logvar | z_proj | pad]
):
    L = LATENT_DIM
    F = FEATURE_DIM

    # ---- static views into the packed weight slab (one input DMA) ----
    whhe  = w_ref[R_ENC_WHH:R_ENC_WHH + H, :]            # (32, 128)
    headw = w_ref[R_HEAD_W:R_HEAD_W + H, :]              # (32, 128) cols 0:2L valid
    headb = w_ref[R_HEAD_B:R_HEAD_B + 1, :]              # (1, 128)
    wihd  = w_ref[R_DEC_WIH:R_DEC_WIH + L, :]            # (16, 128)
    whhd  = w_ref[R_DEC_WHH:R_DEC_WHH + H, :]            # (32, 128)
    bd    = w_ref[R_DEC_B:R_DEC_B + 1, :]                # (1, 128)
    recw  = w_ref[R_REC_W:R_REC_W + H, :]                # (32, 128) cols 0:V valid
    recb  = w_ref[R_REC_B:R_REC_B + 1, :]                # (1, 128)
    featw = w_ref[R_FEAT_W:R_FEAT_W + L, :]              # (16, 128) cols 0:F valid
    featb = w_ref[R_FEAT_B:R_FEAT_B + 1, :]              # (1, 128)

    eps = eps_ref[...]                                   # (B, L)

    # ---- encoder LSTM: per-step gate rows gathered from the in-slab LUT ----
    # LUT row v = embedding[v] @ W_ih^T + (b_ih + b_hh); only h @ W_hh remains
    # on the serial critical path.
    h = jnp.zeros((B, H), jnp.float32)
    c = jnp.zeros((B, H), jnp.float32)
    for t in range(SEQ_LEN):  # static unroll
        rows = [w_ref[pl.ds(R_ENC_LUT + tok_ref[b, t], 1), :] for b in range(B)]
        x_gates = jnp.concatenate(rows, axis=0)          # (B, 4H), fresh per step
        h, c = _lstm_cell(x_gates, h, c, whhe)

    # ---- fused mu/logvar head + reparameterize ----
    head = jnp.dot(h, headw, preferred_element_type=jnp.float32) + headb   # (B, 128)
    mu = head[:, 0:L]
    logvar = head[:, L:2 * L]
    z = mu + eps * jnp.exp(0.5 * logvar)

    # ---- decoder LSTM: input term z @ W_ih + b is loop-invariant ----
    zin = jnp.dot(z, wihd, preferred_element_type=jnp.float32) + bd        # (B, 4H)
    hd = jnp.zeros((B, H), jnp.float32)
    cd = jnp.zeros((B, H), jnp.float32)
    hd_steps = []
    for t in range(SEQ_LEN):
        hd, cd = _lstm_cell(zin, hd, cd, whhd)
        hd_steps.append(hd)

    # ---- batched recon projection, b-major so no wrapper transpose ----
    hd_all = jnp.concatenate(
        [h_t[b:b + 1, :] for b in range(B) for h_t in hd_steps], axis=0)   # (B*S, H)
    recon = jnp.dot(hd_all, recw, preferred_element_type=jnp.float32) + recb  # (B*S, 128)
    recon_ref[...] = recon.reshape(B, SEQ_LEN, LANES)    # free relayout, lane-dense store

    # ---- feature projection + single lane-dense packed small-output store ----
    zproj = jnp.dot(z, featw, preferred_element_type=jnp.float32) + featb  # (B, 128)
    pad = jnp.zeros((B, LANES - (3 * L + F)), jnp.float32)
    small_ref[...] = jnp.concatenate(
        [z, head[:, 0:2 * L], zproj[:, 0:F], pad], axis=1)                 # (B, 128)


# ------------------------------ wrapper ---------------------------------------
def _vmem_spec():
    return pl.BlockSpec(memory_space=pltpu.MemorySpace.VMEM)


def _smem_spec():
    return pl.BlockSpec(memory_space=pltpu.MemorySpace.SMEM)


@jax.jit
def guidance_vae_forward(harmony_tokens, w_slab, eps):
    """Returns (z, mu, logvar, recon_x, z_proj) matching the PyTorch forward."""
    recon_slab, small = pl.pallas_call(
        guidance_vae_kernel,
        out_shape=(
            jax.ShapeDtypeStruct((B, SEQ_LEN, LANES), jnp.float32),  # recon slab
            jax.ShapeDtypeStruct((B, LANES), jnp.float32),           # packed small outs
        ),
        in_specs=[_smem_spec(), _vmem_spec(), _vmem_spec()],
        out_specs=(_vmem_spec(), _vmem_spec()),
    )(harmony_tokens, eps, w_slab)

    L = LATENT_DIM
    recon_x = recon_slab[:, :, :VOCAB]                  # (B, S, V), single slice
    z = small[:, 0:L]
    mu = small[:, L:2 * L]
    logvar = small[:, 2 * L:3 * L]
    z_proj = small[:, 3 * L:3 * L + FEATURE_DIM]
    return z, mu, logvar, recon_x, z_proj


# --------------------------- parameter init / packing -------------------------
def init_params(key):
    """Deterministic synthetic parameters with the same shapes as the PyTorch
    module, stored pre-transposed for MXU-friendly (in, out) matmuls."""
    ks = jax.random.split(key, 16)
    s = 0.1

    def n(k, shape):
        return (s * jax.random.normal(k, shape)).astype(jnp.float32)

    return {
        "embedding": n(ks[0], (VOCAB, EMB_DIM)),
        # encoder LSTM: PyTorch (4H, E)/(4H, H) -> transposed; gate order [i,f,g,o]
        "enc_w_ih_t": n(ks[1], (EMB_DIM, 4 * HIDDEN_DIM)),
        "enc_w_hh_t": n(ks[2], (HIDDEN_DIM, 4 * HIDDEN_DIM)),
        "enc_b": n(ks[3], (1, 4 * HIDDEN_DIM)),       # b_ih + b_hh combined
        "mu_w_t": n(ks[4], (HIDDEN_DIM, LATENT_DIM)),
        "mu_b": n(ks[5], (1, LATENT_DIM)),
        "lv_w_t": n(ks[6], (HIDDEN_DIM, LATENT_DIM)),
        "lv_b": n(ks[7], (1, LATENT_DIM)),
        # decoder LSTM: PyTorch (4H, L)/(4H, H) -> transposed
        "dec_w_ih_t": n(ks[8], (LATENT_DIM, 4 * HIDDEN_DIM)),
        "dec_w_hh_t": n(ks[9], (HIDDEN_DIM, 4 * HIDDEN_DIM)),
        "dec_b": n(ks[10], (1, 4 * HIDDEN_DIM)),
        "rec_w_t": n(ks[11], (HIDDEN_DIM, VOCAB)),
        "rec_b": n(ks[12], (1, VOCAB)),
        "feat_w_t": n(ks[13], (LATENT_DIM, FEATURE_DIM)),
        "feat_b": n(ks[14], (1, FEATURE_DIM)),
    }


def pack_params(p):
    """Pack all weights/biases into one lane-padded (W_ROWS, 128) f32 slab,
    including the precomputed embedding->gate LUT.  Done once at init so the
    jitted forward issues a single weight DMA.  The g-gate columns of every
    LSTM input/recurrent weight and bias are pre-scaled by 2 so the kernel can
    recover tanh via a single sigmoid (tanh(a) = 2*sigmoid(2a) - 1)."""
    def pad_cols(x):
        x = jnp.asarray(x, jnp.float32)
        return jnp.pad(x, ((0, 0), (0, LANES - x.shape[1])))

    def scale_g(x):
        x = jnp.asarray(x, jnp.float32)
        return x.at[:, 2 * H:3 * H].multiply(2.0)

    # encoder gate LUT: row v = embedding[v] @ W_ih^T + (b_ih + b_hh)
    enc_lut = p["embedding"] @ p["enc_w_ih_t"] + p["enc_b"]   # (VOCAB, 4H)

    slab = jnp.zeros((W_ROWS, LANES), jnp.float32)

    def put(slab, row, x):
        x = pad_cols(x)
        return slab.at[row:row + x.shape[0], :].set(x)

    slab = put(slab, R_ENC_LUT, scale_g(enc_lut))
    slab = put(slab, R_ENC_WHH, scale_g(p["enc_w_hh_t"]))
    # fused [mu | logvar] head
    slab = put(slab, R_HEAD_W, jnp.concatenate([p["mu_w_t"], p["lv_w_t"]], axis=1))
    slab = put(slab, R_HEAD_B, jnp.concatenate([p["mu_b"], p["lv_b"]], axis=1))
    slab = put(slab, R_DEC_WIH, scale_g(p["dec_w_ih_t"]))
    slab = put(slab, R_DEC_WHH, scale_g(p["dec_w_hh_t"]))
    slab = put(slab, R_DEC_B, scale_g(p["dec_b"]))
    slab = put(slab, R_REC_W, p["rec_w_t"])
    slab = put(slab, R_REC_B, p["rec_b"])
    slab = put(slab, R_FEAT_W, p["feat_w_t"])
    slab = put(slab, R_FEAT_B, p["feat_b"])
    return slab


# ------------------------------- main ------------------------------------------
if __name__ == "__main__":
    key = jax.random.PRNGKey(0)
    k_tok, k_eps, k_par = jax.random.split(key, 3)

    harmony_tokens = jax.random.randint(k_tok, (B, SEQ_LEN), 0, VOCAB, dtype=jnp.int32)
    # eps drawn in glue so the reparameterization is deterministic/reproducible
    eps = jax.random.normal(k_eps, (B, LATENT_DIM), dtype=jnp.float32)
    params = init_params(k_par)
    w_slab = jax.block_until_ready(pack_params(params))

    z, mu, logvar, recon_x, z_proj = guidance_vae_forward(harmony_tokens, w_slab, eps)
    jax.block_until_ready((z, mu, logvar, recon_x, z_proj))

    assert z.shape == (B, LATENT_DIM)
    assert mu.shape == (B, LATENT_DIM)
    assert logvar.shape == (B, LATENT_DIM)
    assert recon_x.shape == (B, SEQ_LEN, VOCAB)
    assert z_proj.shape == (B, FEATURE_DIM)
    assert all(bool(jnp.all(jnp.isfinite(a))) for a in (z, mu, logvar, recon_x, z_proj))

    print("KERNEL_OK")
</pallas_src>

<mosaic_0001>
module attributes {stable_mosaic.version = 11 : i64} {
  func.func @guidance_vae_kernel(%arg0: memref<2x8xi32, #tpu.memory_space<smem>>, %arg1: memref<2x16xf32, #tpu.memory_space<vmem>>, %arg2: memref<224x128xf32, #tpu.memory_space<vmem>>, %arg3: memref<2x8x128xf32, #tpu.memory_space<vmem>>, %arg4: memref<2x128xf32, #tpu.memory_space<vmem>>) attributes {dimension_semantics = [], scalar_prefetch = 0 : i64, scratch_operands = 0 : i64, tpu.core_type = #tpu.core_type<tc>} {
    %c32 = arith.constant 32 : index
    %c0 = arith.constant 0 : index
    %0 = vector.load %arg2[%c32, %c0] : memref<224x128xf32, #tpu.memory_space<vmem>>, vector<32x128xf32>
    %c64 = arith.constant 64 : index
    %c0_0 = arith.constant 0 : index
    %1 = vector.load %arg2[%c64, %c0_0] : memref<224x128xf32, #tpu.memory_space<vmem>>, vector<32x128xf32>
    %c96 = arith.constant 96 : index
    %c0_1 = arith.constant 0 : index
    %2 = vector.load %arg2[%c96, %c0_1] : memref<224x128xf32, #tpu.memory_space<vmem>>, vector<1x128xf32>
    %c104 = arith.constant 104 : index
    %c0_2 = arith.constant 0 : index
    %3 = vector.load %arg2[%c104, %c0_2] : memref<224x128xf32, #tpu.memory_space<vmem>>, vector<16x128xf32>
    %c120 = arith.constant 120 : index
    %c0_3 = arith.constant 0 : index
    %4 = vector.load %arg2[%c120, %c0_3] : memref<224x128xf32, #tpu.memory_space<vmem>>, vector<32x128xf32>
    %c152 = arith.constant 152 : index
    %c0_4 = arith.constant 0 : index
    %5 = vector.load %arg2[%c152, %c0_4] : memref<224x128xf32, #tpu.memory_space<vmem>>, vector<1x128xf32>
    %c160 = arith.constant 160 : index
    %c0_5 = arith.constant 0 : index
    %6 = vector.load %arg2[%c160, %c0_5] : memref<224x128xf32, #tpu.memory_space<vmem>>, vector<32x128xf32>
    %c192 = arith.constant 192 : index
    %c0_6 = arith.constant 0 : index
    %7 = vector.load %arg2[%c192, %c0_6] : memref<224x128xf32, #tpu.memory_space<vmem>>, vector<1x128xf32>
    %c200 = arith.constant 200 : index
    %c0_7 = arith.constant 0 : index
    %8 = vector.load %arg2[%c200, %c0_7] : memref<224x128xf32, #tpu.memory_space<vmem>>, vector<16x128xf32>
    %c216 = arith.constant 216 : index
    %c0_8 = arith.constant 0 : index
    %9 = vector.load %arg2[%c216, %c0_8] : memref<224x128xf32, #tpu.memory_space<vmem>>, vector<1x128xf32>
    %c0_9 = arith.constant 0 : index
    %c0_10 = arith.constant 0 : index
    %10 = vector.load %arg1[%c0_9, %c0_10] : memref<2x16xf32, #tpu.memory_space<vmem>>, vector<2x16xf32>
    %cst = arith.constant 0.000000e+00 : f32
    %11 = vector.broadcast %cst : f32 to vector<2x32xf32>
    %cst_11 = arith.constant 0.000000e+00 : f32
    %12 = vector.broadcast %cst_11 : f32 to vector<2x32xf32>
    %c0_12 = arith.constant 0 : index
    %c0_13 = arith.constant 0 : index
    %13 = memref.load %arg0[%c0_12, %c0_13] : memref<2x8xi32, #tpu.memory_space<smem>>
    %c0_i32 = arith.constant 0 : i32
    %14 = arith.addi %c0_i32, %13 : i32
    %15 = arith.index_cast %14 : i32 to index
    %c0_14 = arith.constant 0 : index
    %16 = vector.load %arg2[%15, %c0_14] : memref<224x128xf32, #tpu.memory_space<vmem>>, vector<1x128xf32>
    %c1 = arith.constant 1 : index
    %c0_15 = arith.constant 0 : index
    %17 = memref.load %arg0[%c1, %c0_15] : memref<2x8xi32, #tpu.memory_space<smem>>
    %c0_i32_16 = arith.constant 0 : i32
    %18 = arith.addi %c0_i32_16, %17 : i32
    %19 = arith.index_cast %18 : i32 to index
    %c0_17 = arith.constant 0 : index
    %20 = vector.load %arg2[%19, %c0_17] : memref<224x128xf32, #tpu.memory_space<vmem>>, vector<1x128xf32>
    %21 = tpu.concatenate %16, %20 in 0 : vector<1x128xf32>, vector<1x128xf32> -> vector<2x128xf32>
    %cst_18 = arith.constant dense<0.000000e+00> : vector<2x128xf32>
    %22 = tpu.matmul %11, %0, %cst_18 {dimension_numbers = #tpu.dot_dimension_numbers<[1], [0], [0], [1], [0, 0, 1, 1], [], []>} : vector<2x32xf32>, vector<32x128xf32>, vector<2x128xf32> -> vector<2x128xf32>
    %23 = arith.addf %21, %22 : vector<2x128xf32>
    %24 = arith.negf %23 : vector<2x128xf32>
    %25 = math.exp %24 : vector<2x128xf32>
    %cst_19 = arith.constant 1.000000e+00 : f32
    %26 = vector.broadcast %cst_19 : f32 to vector<2x128xf32>
    %27 = arith.addf %26, %25 : vector<2x128xf32>
    %28 = arith.divf %26, %27 : vector<2x128xf32>
    %29 = vector.extract_strided_slice %28 {offsets = [0, 0], sizes = [2, 32], strides = [1, 1]} : vector<2x128xf32> to vector<2x32xf32>
    %30 = vector.extract_strided_slice %28 {offsets = [0, 32], sizes = [2, 32], strides = [1, 1]} : vector<2x128xf32> to vector<2x32xf32>
    %31 = vector.extract_strided_slice %28 {offsets = [0, 64], sizes = [2, 32], strides = [1, 1]} : vector<2x128xf32> to vector<2x32xf32>
    %cst_20 = arith.constant 2.000000e+00 : f32
    %32 = vector.broadcast %cst_20 : f32 to vector<2x32xf32>
    %33 = arith.mulf %32, %31 : vector<2x32xf32>
    %cst_21 = arith.constant 1.000000e+00 : f32
    %34 = vector.broadcast %cst_21 : f32 to vector<2x32xf32>
    %35 = arith.subf %33, %34 : vector<2x32xf32>
    %36 = vector.extract_strided_slice %28 {offsets = [0, 96], sizes = [2, 32], strides = [1, 1]} : vector<2x128xf32> to vector<2x32xf32>
    %37 = arith.mulf %30, %12 : vector<2x32xf32>
    %38 = arith.mulf %29, %35 : vector<2x32xf32>
    %39 = arith.addf %37, %38 : vector<2x32xf32>
    %cst_22 = arith.constant 2.000000e+00 : f32
    %40 = vector.broadcast %cst_22 : f32 to vector<2x32xf32>
    %41 = arith.mulf %40, %39 : vector<2x32xf32>
    %42 = arith.negf %41 : vector<2x32xf32>
    %43 = math.exp %42 : vector<2x32xf32>
    %cst_23 = arith.constant 1.000000e+00 : f32
    %44 = vector.broadcast %cst_23 : f32 to vector<2x32xf32>
    %45 = arith.addf %44, %43 : vector<2x32xf32>
    %46 = arith.divf %44, %45 : vector<2x32xf32>
    %cst_24 = arith.constant 2.000000e+00 : f32
    %47 = vector.broadcast %cst_24 : f32 to vector<2x32xf32>
    %48 = arith.mulf %47, %46 : vector<2x32xf32>
    %cst_25 = arith.constant 1.000000e+00 : f32
    %49 = vector.broadcast %cst_25 : f32 to vector<2x32xf32>
    %50 = arith.subf %48, %49 : vector<2x32xf32>
    %51 = arith.mulf %36, %50 : vector<2x32xf32>
    %c0_26 = arith.constant 0 : index
    %c1_27 = arith.constant 1 : index
    %52 = memref.load %arg0[%c0_26, %c1_27] : memref<2x8xi32, #tpu.memory_space<smem>>
    %c0_i32_28 = arith.constant 0 : i32
    %53 = arith.addi %c0_i32_28, %52 : i32
    %54 = arith.index_cast %53 : i32 to index
    %c0_29 = arith.constant 0 : index
    %55 = vector.load %arg2[%54, %c0_29] : memref<224x128xf32, #tpu.memory_space<vmem>>, vector<1x128xf32>
    %c1_30 = arith.constant 1 : index
    %c1_31 = arith.constant 1 : index
    %56 = memref.load %arg0[%c1_30, %c1_31] : memref<2x8xi32, #tpu.memory_space<smem>>
    %c0_i32_32 = arith.constant 0 : i32
    %57 = arith.addi %c0_i32_32, %56 : i32
    %58 = arith.index_cast %57 : i32 to index
    %c0_33 = arith.constant 0 : index
    %59 = vector.load %arg2[%58, %c0_33] : memref<224x128xf32, #tpu.memory_space<vmem>>, vector<1x128xf32>
    %60 = tpu.concatenate %55, %59 in 0 : vector<1x128xf32>, vector<1x128xf32> -> vector<2x128xf32>
    %cst_34 = arith.constant dense<0.000000e+00> : vector<2x128xf32>
    %61 = tpu.matmul %51, %0, %cst_34 {dimension_numbers = #tpu.dot_dimension_numbers<[1], [0], [0], [1], [0, 0, 1, 1], [], []>} : vector<2x32xf32>, vector<32x128xf32>, vector<2x128xf32> -> vector<2x128xf32>
    %62 = arith.addf %60, %61 : vector<2x128xf32>
    %63 = arith.negf %62 : vector<2x128xf32>
    %64 = math.exp %63 : vector<2x128xf32>
    %cst_35 = arith.constant 1.000000e+00 : f32
    %65 = vector.broadcast %cst_35 : f32 to vector<2x128xf32>
    %66 = arith.addf %65, %64 : vector<2x128xf32>
    %67 = arith.divf %65, %66 : vector<2x128xf32>
    %68 = vector.extract_strided_slice %67 {offsets = [0, 0], sizes = [2, 32], strides = [1, 1]} : vector<2x128xf32> to vector<2x32xf32>
    %69 = vector.extract_strided_slice %67 {offsets = [0, 32], sizes = [2, 32], strides = [1, 1]} : vector<2x128xf32> to vector<2x32xf32>
    %70 = vector.extract_strided_slice %67 {offsets = [0, 64], sizes = [2, 32], strides = [1, 1]} : vector<2x128xf32> to vector<2x32xf32>
    %cst_36 = arith.constant 2.000000e+00 : f32
    %71 = vector.broadcast %cst_36 : f32 to vector<2x32xf32>
    %72 = arith.mulf %71, %70 : vector<2x32xf32>
    %cst_37 = arith.constant 1.000000e+00 : f32
    %73 = vector.broadcast %cst_37 : f32 to vector<2x32xf32>
    %74 = arith.subf %72, %73 : vector<2x32xf32>
    %75 = vector.extract_strided_slice %67 {offsets = [0, 96], sizes = [2, 32], strides = [1, 1]} : vector<2x128xf32> to vector<2x32xf32>
    %76 = arith.mulf %69, %39 : vector<2x32xf32>
    %77 = arith.mulf %68, %74 : vector<2x32xf32>
    %78 = arith.addf %76, %77 : vector<2x32xf32>
    %cst_38 = arith.constant 2.000000e+00 : f32
    %79 = vector.broadcast %cst_38 : f32 to vector<2x32xf32>
    %80 = arith.mulf %79, %78 : vector<2x32xf32>
    %81 = arith.negf %80 : vector<2x32xf32>
    %82 = math.exp %81 : vector<2x32xf32>
    %cst_39 = arith.constant 1.000000e+00 : f32
    %83 = vector.broadcast %cst_39 : f32 to vector<2x32xf32>
    %84 = arith.addf %83, %82 : vector<2x32xf32>
    %85 = arith.divf %83, %84 : vector<2x32xf32>
    %cst_40 = arith.constant 2.000000e+00 : f32
    %86 = vector.broadcast %cst_40 : f32 to vector<2x32xf32>
    %87 = arith.mulf %86, %85 : vector<2x32xf32>
    %cst_41 = arith.constant 1.000000e+00 : f32
    %88 = vector.broadcast %cst_41 : f32 to vector<2x32xf32>
    %89 = arith.subf %87, %88 : vector<2x32xf32>
    %90 = arith.mulf %75, %89 : vector<2x32xf32>
    %c0_42 = arith.constant 0 : index
    %c2 = arith.constant 2 : index
    %91 = memref.load %arg0[%c0_42, %c2] : memref<2x8xi32, #tpu.memory_space<smem>>
    %c0_i32_43 = arith.constant 0 : i32
    %92 = arith.addi %c0_i32_43, %91 : i32
    %93 = arith.index_cast %92 : i32 to index
    %c0_44 = arith.constant 0 : index
    %94 = vector.load %arg2[%93, %c0_44] : memref<224x128xf32, #tpu.memory_space<vmem>>, vector<1x128xf32>
    %c1_45 = arith.constant 1 : index
    %c2_46 = arith.constant 2 : index
    %95 = memref.load %arg0[%c1_45, %c2_46] : memref<2x8xi32, #tpu.memory_space<smem>>
    %c0_i32_47 = arith.constant 0 : i32
    %96 = arith.addi %c0_i32_47, %95 : i32
    %97 = arith.index_cast %96 : i32 to index
    %c0_48 = arith.constant 0 : index
    %98 = vector.load %arg2[%97, %c0_48] : memref<224x128xf32, #tpu.memory_space<vmem>>, vector<1x128xf32>
    %99 = tpu.concatenate %94, %98 in 0 : vector<1x128xf32>, vector<1x128xf32> -> vector<2x128xf32>
    %cst_49 = arith.constant dense<0.000000e+00> : vector<2x128xf32>
    %100 = tpu.matmul %90, %0, %cst_49 {dimension_numbers = #tpu.dot_dimension_numbers<[1], [0], [0], [1], [0, 0, 1, 1], [], []>} : vector<2x32xf32>, vector<32x128xf32>, vector<2x128xf32> -> vector<2x128xf32>
    %101 = arith.addf %99, %100 : vector<2x128xf32>
    %102 = arith.negf %101 : vector<2x128xf32>
    %103 = math.exp %102 : vector<2x128xf32>
    %cst_50 = arith.constant 1.000000e+00 : f32
    %104 = vector.broadcast %cst_50 : f32 to vector<2x128xf32>
    %105 = arith.addf %104, %103 : vector<2x128xf32>
    %106 = arith.divf %104, %105 : vector<2x128xf32>
    %107 = vector.extract_strided_slice %106 {offsets = [0, 0], sizes = [2, 32], strides = [1, 1]} : vector<2x128xf32> to vector<2x32xf32>
    %108 = vector.extract_strided_slice %106 {offsets = [0, 32], sizes = [2, 32], strides = [1, 1]} : vector<2x128xf32> to vector<2x32xf32>
    %109 = vector.extract_strided_slice %106 {offsets = [0, 64], sizes = [2, 32], strides = [1, 1]} : vector<2x128xf32> to vector<2x32xf32>
    %cst_51 = arith.constant 2.000000e+00 : f32
    %110 = vector.broadcast %cst_51 : f32 to vector<2x32xf32>
    %111 = arith.mulf %110, %109 : vector<2x32xf32>
    %cst_52 = arith.constant 1.000000e+00 : f32
    %112 = vector.broadcast %cst_52 : f32 to vector<2x32xf32>
    %113 = arith.subf %111, %112 : vector<2x32xf32>
    %114 = vector.extract_strided_slice %106 {offsets = [0, 96], sizes = [2, 32], strides = [1, 1]} : vector<2x128xf32> to vector<2x32xf32>
    %115 = arith.mulf %108, %78 : vector<2x32xf32>
    %116 = arith.mulf %107, %113 : vector<2x32xf32>
    %117 = arith.addf %115, %116 : vector<2x32xf32>
    %cst_53 = arith.constant 2.000000e+00 : f32
    %118 = vector.broadcast %cst_53 : f32 to vector<2x32xf32>
    %119 = arith.mulf %118, %117 : vector<2x32xf32>
    %120 = arith.negf %119 : vector<2x32xf32>
    %121 = math.exp %120 : vector<2x32xf32>
    %cst_54 = arith.constant 1.000000e+00 : f32
    %122 = vector.broadcast %cst_54 : f32 to vector<2x32xf32>
    %123 = arith.addf %122, %121 : vector<2x32xf32>
    %124 = arith.divf %122, %123 : vector<2x32xf32>
    %cst_55 = arith.constant 2.000000e+00 : f32
    %125 = vector.broadcast %cst_55 : f32 to vector<2x32xf32>
    %126 = arith.mulf %125, %124 : vector<2x32xf32>
    %cst_56 = arith.constant 1.000000e+00 : f32
    %127 = vector.broadcast %cst_56 : f32 to vector<2x32xf32>
    %128 = arith.subf %126, %127 : vector<2x32xf32>
    %129 = arith.mulf %114, %128 : vector<2x32xf32>
    %c0_57 = arith.constant 0 : index
    %c3 = arith.constant 3 : index
    %130 = memref.load %arg0[%c0_57, %c3] : memref<2x8xi32, #tpu.memory_space<smem>>
    %c0_i32_58 = arith.constant 0 : i32
    %131 = arith.addi %c0_i32_58, %130 : i32
    %132 = arith.index_cast %131 : i32 to index
    %c0_59 = arith.constant 0 : index
    %133 = vector.load %arg2[%132, %c0_59] : memref<224x128xf32, #tpu.memory_space<vmem>>, vector<1x128xf32>
    %c1_60 = arith.constant 1 : index
    %c3_61 = arith.constant 3 : index
    %134 = memref.load %arg0[%c1_60, %c3_61] : memref<2x8xi32, #tpu.memory_space<smem>>
    %c0_i32_62 = arith.constant 0 : i32
    %135 = arith.addi %c0_i32_62, %134 : i32
    %136 = arith.index_cast %135 : i32 to index
    %c0_63 = arith.constant 0 : index
    %137 = vector.load %arg2[%136, %c0_63] : memref<224x128xf32, #tpu.memory_space<vmem>>, vector<1x128xf32>
    %138 = tpu.concatenate %133, %137 in 0 : vector<1x128xf32>, vector<1x128xf32> -> vector<2x128xf32>
    %cst_64 = arith.constant dense<0.000000e+00> : vector<2x128xf32>
    %139 = tpu.matmul %129, %0, %cst_64 {dimension_numbers = #tpu.dot_dimension_numbers<[1], [0], [0], [1], [0, 0, 1, 1], [], []>} : vector<2x32xf32>, vector<32x128xf32>, vector<2x128xf32> -> vector<2x128xf32>
    %140 = arith.addf %138, %139 : vector<2x128xf32>
    %141 = arith.negf %140 : vector<2x128xf32>
    %142 = math.exp %141 : vector<2x128xf32>
    %cst_65 = arith.constant 1.000000e+00 : f32
    %143 = vector.broadcast %cst_65 : f32 to vector<2x128xf32>
    %144 = arith.addf %143, %142 : vector<2x128xf32>
    %145 = arith.divf %143, %144 : vector<2x128xf32>
    %146 = vector.extract_strided_slice %145 {offsets = [0, 0], sizes = [2, 32], strides = [1, 1]} : vector<2x128xf32> to vector<2x32xf32>
    %147 = vector.extract_strided_slice %145 {offsets = [0, 32], sizes = [2, 32], strides = [1, 1]} : vector<2x128xf32> to vector<2x32xf32>
    %148 = vector.extract_strided_slice %145 {offsets = [0, 64], sizes = [2, 32], strides = [1, 1]} : vector<2x128xf32> to vector<2x32xf32>
    %cst_66 = arith.constant 2.000000e+00 : f32
    %149 = vector.broadcast %cst_66 : f32 to vector<2x32xf32>
    %150 = arith.mulf %149, %148 : vector<2x32xf32>
    %cst_67 = arith.constant 1.000000e+00 : f32
    %151 = vector.broadcast %cst_67 : f32 to vector<2x32xf32>
    %152 = arith.subf %150, %151 : vector<2x32xf32>
    %153 = vector.extract_strided_slice %145 {offsets = [0, 96], sizes = [2, 32], strides = [1, 1]} : vector<2x128xf32> to vector<2x32xf32>
    %154 = arith.mulf %147, %117 : vector<2x32xf32>
    %155 = arith.mulf %146, %152 : vector<2x32xf32>
    %156 = arith.addf %154, %155 : vector<2x32xf32>
    %cst_68 = arith.constant 2.000000e+00 : f32
    %157 = vector.broadcast %cst_68 : f32 to vector<2x32xf32>
    %158 = arith.mulf %157, %156 : vector<2x32xf32>
    %159 = arith.negf %158 : vector<2x32xf32>
    %160 = math.exp %159 : vector<2x32xf32>
    %cst_69 = arith.constant 1.000000e+00 : f32
    %161 = vector.broadcast %cst_69 : f32 to vector<2x32xf32>
    %162 = arith.addf %161, %160 : vector<2x32xf32>
    %163 = arith.divf %161, %162 : vector<2x32xf32>
    %cst_70 = arith.constant 2.000000e+00 : f32
    %164 = vector.broadcast %cst_70 : f32 to vector<2x32xf32>
    %165 = arith.mulf %164, %163 : vector<2x32xf32>
    %cst_71 = arith.constant 1.000000e+00 : f32
    %166 = vector.broadcast %cst_71 : f32 to vector<2x32xf32>
    %167 = arith.subf %165, %166 : vector<2x32xf32>
    %168 = arith.mulf %153, %167 : vector<2x32xf32>
    %c0_72 = arith.constant 0 : index
    %c4 = arith.constant 4 : index
    %169 = memref.load %arg0[%c0_72, %c4] : memref<2x8xi32, #tpu.memory_space<smem>>
    %c0_i32_73 = arith.constant 0 : i32
    %170 = arith.addi %c0_i32_73, %169 : i32
    %171 = arith.index_cast %170 : i32 to index
    %c0_74 = arith.constant 0 : index
    %172 = vector.load %arg2[%171, %c0_74] : memref<224x128xf32, #tpu.memory_space<vmem>>, vector<1x128xf32>
    %c1_75 = arith.constant 1 : index
    %c4_76 = arith.constant 4 : index
    %173 = memref.load %arg0[%c1_75, %c4_76] : memref<2x8xi32, #tpu.memory_space<smem>>
    %c0_i32_77 = arith.constant 0 : i32
    %174 = arith.addi %c0_i32_77, %173 : i32
    %175 = arith.index_cast %174 : i32 to index
    %c0_78 = arith.constant 0 : index
    %176 = vector.load %arg2[%175, %c0_78] : memref<224x128xf32, #tpu.memory_space<vmem>>, vector<1x128xf32>
    %177 = tpu.concatenate %172, %176 in 0 : vector<1x128xf32>, vector<1x128xf32> -> vector<2x128xf32>
    %cst_79 = arith.constant dense<0.000000e+00> : vector<2x128xf32>
    %178 = tpu.matmul %168, %0, %cst_79 {dimension_numbers = #tpu.dot_dimension_numbers<[1], [0], [0], [1], [0, 0, 1, 1], [], []>} : vector<2x32xf32>, vector<32x128xf32>, vector<2x128xf32> -> vector<2x128xf32>
    %179 = arith.addf %177, %178 : vector<2x128xf32>
    %180 = arith.negf %179 : vector<2x128xf32>
    %181 = math.exp %180 : vector<2x128xf32>
    %cst_80 = arith.constant 1.000000e+00 : f32
    %182 = vector.broadcast %cst_80 : f32 to vector<2x128xf32>
    %183 = arith.addf %182, %181 : vector<2x128xf32>
    %184 = arith.divf %182, %183 : vector<2x128xf32>
    %185 = vector.extract_strided_slice %184 {offsets = [0, 0], sizes = [2, 32], strides = [1, 1]} : vector<2x128xf32> to vector<2x32xf32>
    %186 = vector.extract_strided_slice %184 {offsets = [0, 32], sizes = [2, 32], strides = [1, 1]} : vector<2x128xf32> to vector<2x32xf32>
    %187 = vector.extract_strided_slice %184 {offsets = [0, 64], sizes = [2, 32], strides = [1, 1]} : vector<2x128xf32> to vector<2x32xf32>
    %cst_81 = arith.constant 2.000000e+00 : f32
    %188 = vector.broadcast %cst_81 : f32 to vector<2x32xf32>
    %189 = arith.mulf %188, %187 : vector<2x32xf32>
    %cst_82 = arith.constant 1.000000e+00 : f32
    %190 = vector.broadcast %cst_82 : f32 to vector<2x32xf32>
    %191 = arith.subf %189, %190 : vector<2x32xf32>
    %192 = vector.extract_strided_slice %184 {offsets = [0, 96], sizes = [2, 32], strides = [1, 1]} : vector<2x128xf32> to vector<2x32xf32>
    %193 = arith.mulf %186, %156 : vector<2x32xf32>
    %194 = arith.mulf %185, %191 : vector<2x32xf32>
    %195 = arith.addf %193, %194 : vector<2x32xf32>
    %cst_83 = arith.constant 2.000000e+00 : f32
    %196 = vector.broadcast %cst_83 : f32 to vector<2x32xf32>
    %197 = arith.mulf %196, %195 : vector<2x32xf32>
    %198 = arith.negf %197 : vector<2x32xf32>
    %199 = math.exp %198 : vector<2x32xf32>
    %cst_84 = arith.constant 1.000000e+00 : f32
    %200 = vector.broadcast %cst_84 : f32 to vector<2x32xf32>
    %201 = arith.addf %200, %199 : vector<2x32xf32>
    %202 = arith.divf %200, %201 : vector<2x32xf32>
    %cst_85 = arith.constant 2.000000e+00 : f32
    %203 = vector.broadcast %cst_85 : f32 to vector<2x32xf32>
    %204 = arith.mulf %203, %202 : vector<2x32xf32>
    %cst_86 = arith.constant 1.000000e+00 : f32
    %205 = vector.broadcast %cst_86 : f32 to vector<2x32xf32>
    %206 = arith.subf %204, %205 : vector<2x32xf32>
    %207 = arith.mulf %192, %206 : vector<2x32xf32>
    %c0_87 = arith.constant 0 : index
    %c5 = arith.constant 5 : index
    %208 = memref.load %arg0[%c0_87, %c5] : memref<2x8xi32, #tpu.memory_space<smem>>
    %c0_i32_88 = arith.constant 0 : i32
    %209 = arith.addi %c0_i32_88, %208 : i32
    %210 = arith.index_cast %209 : i32 to index
    %c0_89 = arith.constant 0 : index
    %211 = vector.load %arg2[%210, %c0_89] : memref<224x128xf32, #tpu.memory_space<vmem>>, vector<1x128xf32>
    %c1_90 = arith.constant 1 : index
    %c5_91 = arith.constant 5 : index
    %212 = memref.load %arg0[%c1_90, %c5_91] : memref<2x8xi32, #tpu.memory_space<smem>>
    %c0_i32_92 = arith.constant 0 : i32
    %213 = arith.addi %c0_i32_92, %212 : i32
    %214 = arith.index_cast %213 : i32 to index
    %c0_93 = arith.constant 0 : index
    %215 = vector.load %arg2[%214, %c0_93] : memref<224x128xf32, #tpu.memory_space<vmem>>, vector<1x128xf32>
    %216 = tpu.concatenate %211, %215 in 0 : vector<1x128xf32>, vector<1x128xf32> -> vector<2x128xf32>
    %cst_94 = arith.constant dense<0.000000e+00> : vector<2x128xf32>
    %217 = tpu.matmul %207, %0, %cst_94 {dimension_numbers = #tpu.dot_dimension_numbers<[1], [0], [0], [1], [0, 0, 1, 1], [], []>} : vector<2x32xf32>, vector<32x128xf32>, vector<2x128xf32> -> vector<2x128xf32>
    %218 = arith.addf %216, %217 : vector<2x128xf32>
    %219 = arith.negf %218 : vector<2x128xf32>
    %220 = math.exp %219 : vector<2x128xf32>
    %cst_95 = arith.constant 1.000000e+00 : f32
    %221 = vector.broadcast %cst_95 : f32 to vector<2x128xf32>
    %222 = arith.addf %221, %220 : vector<2x128xf32>
    %223 = arith.divf %221, %222 : vector<2x128xf32>
    %224 = vector.extract_strided_slice %223 {offsets = [0, 0], sizes = [2, 32], strides = [1, 1]} : vector<2x128xf32> to vector<2x32xf32>
    %225 = vector.extract_strided_slice %223 {offsets = [0, 32], sizes = [2, 32], strides = [1, 1]} : vector<2x128xf32> to vector<2x32xf32>
    %226 = vector.extract_strided_slice %223 {offsets = [0, 64], sizes = [2, 32], strides = [1, 1]} : vector<2x128xf32> to vector<2x32xf32>
    %cst_96 = arith.constant 2.000000e+00 : f32
    %227 = vector.broadcast %cst_96 : f32 to vector<2x32xf32>
    %228 = arith.mulf %227, %226 : vector<2x32xf32>
    %cst_97 = arith.constant 1.000000e+00 : f32
    %229 = vector.broadcast %cst_97 : f32 to vector<2x32xf32>
    %230 = arith.subf %228, %229 : vector<2x32xf32>
    %231 = vector.extract_strided_slice %223 {offsets = [0, 96], sizes = [2, 32], strides = [1, 1]} : vector<2x128xf32> to vector<2x32xf32>
    %232 = arith.mulf %225, %195 : vector<2x32xf32>
    %233 = arith.mulf %224, %230 : vector<2x32xf32>
    %234 = arith.addf %232, %233 : vector<2x32xf32>
    %cst_98 = arith.constant 2.000000e+00 : f32
    %235 = vector.broadcast %cst_98 : f32 to vector<2x32xf32>
    %236 = arith.mulf %235, %234 : vector<2x32xf32>
    %237 = arith.negf %236 : vector<2x32xf32>
    %238 = math.exp %237 : vector<2x32xf32>
    %cst_99 = arith.constant 1.000000e+00 : f32
    %239 = vector.broadcast %cst_99 : f32 to vector<2x32xf32>
    %240 = arith.addf %239, %238 : vector<2x32xf32>
    %241 = arith.divf %239, %240 : vector<2x32xf32>
    %cst_100 = arith.constant 2.000000e+00 : f32
    %242 = vector.broadcast %cst_100 : f32 to vector<2x32xf32>
    %243 = arith.mulf %242, %241 : vector<2x32xf32>
    %cst_101 = arith.constant 1.000000e+00 : f32
    %244 = vector.broadcast %cst_101 : f32 to vector<2x32xf32>
    %245 = arith.subf %243, %244 : vector<2x32xf32>
    %246 = arith.mulf %231, %245 : vector<2x32xf32>
    %c0_102 = arith.constant 0 : index
    %c6 = arith.constant 6 : index
    %247 = memref.load %arg0[%c0_102, %c6] : memref<2x8xi32, #tpu.memory_space<smem>>
    %c0_i32_103 = arith.constant 0 : i32
    %248 = arith.addi %c0_i32_103, %247 : i32
    %249 = arith.index_cast %248 : i32 to index
    %c0_104 = arith.constant 0 : index
    %250 = vector.load %arg2[%249, %c0_104] : memref<224x128xf32, #tpu.memory_space<vmem>>, vector<1x128xf32>
    %c1_105 = arith.constant 1 : index
    %c6_106 = arith.constant 6 : index
    %251 = memref.load %arg0[%c1_105, %c6_106] : memref<2x8xi32, #tpu.memory_space<smem>>
    %c0_i32_107 = arith.constant 0 : i32
    %252 = arith.addi %c0_i32_107, %251 : i32
    %253 = arith.index_cast %252 : i32 to index
    %c0_108 = arith.constant 0 : index
    %254 = vector.load %arg2[%253, %c0_108] : memref<224x128xf32, #tpu.memory_space<vmem>>, vector<1x128xf32>
    %255 = tpu.concatenate %250, %254 in 0 : vector<1x128xf32>, vector<1x128xf32> -> vector<2x128xf32>
    %cst_109 = arith.constant dense<0.000000e+00> : vector<2x128xf32>
    %256 = tpu.matmul %246, %0, %cst_109 {dimension_numbers = #tpu.dot_dimension_numbers<[1], [0], [0], [1], [0, 0, 1, 1], [], []>} : vector<2x32xf32>, vector<32x128xf32>, vector<2x128xf32> -> vector<2x128xf32>
    %257 = arith.addf %255, %256 : vector<2x128xf32>
    %258 = arith.negf %257 : vector<2x128xf32>
    %259 = math.exp %258 : vector<2x128xf32>
    %cst_110 = arith.constant 1.000000e+00 : f32
    %260 = vector.broadcast %cst_110 : f32 to vector<2x128xf32>
    %261 = arith.addf %260, %259 : vector<2x128xf32>
    %262 = arith.divf %260, %261 : vector<2x128xf32>
    %263 = vector.extract_strided_slice %262 {offsets = [0, 0], sizes = [2, 32], strides = [1, 1]} : vector<2x128xf32> to vector<2x32xf32>
    %264 = vector.extract_strided_slice %262 {offsets = [0, 32], sizes = [2, 32], strides = [1, 1]} : vector<2x128xf32> to vector<2x32xf32>
    %265 = vector.extract_strided_slice %262 {offsets = [0, 64], sizes = [2, 32], strides = [1, 1]} : vector<2x128xf32> to vector<2x32xf32>
    %cst_111 = arith.constant 2.000000e+00 : f32
    %266 = vector.broadcast %cst_111 : f32 to vector<2x32xf32>
    %267 = arith.mulf %266, %265 : vector<2x32xf32>
    %cst_112 = arith.constant 1.000000e+00 : f32
    %268 = vector.broadcast %cst_112 : f32 to vector<2x32xf32>
    %269 = arith.subf %267, %268 : vector<2x32xf32>
    %270 = vector.extract_strided_slice %262 {offsets = [0, 96], sizes = [2, 32], strides = [1, 1]} : vector<2x128xf32> to vector<2x32xf32>
    %271 = arith.mulf %264, %234 : vector<2x32xf32>
    %272 = arith.mulf %263, %269 : vector<2x32xf32>
    %273 = arith.addf %271, %272 : vector<2x32xf32>
    %cst_113 = arith.constant 2.000000e+00 : f32
    %274 = vector.broadcast %cst_113 : f32 to vector<2x32xf32>
    %275 = arith.mulf %274, %273 : vector<2x32xf32>
    %276 = arith.negf %275 : vector<2x32xf32>
    %277 = math.exp %276 : vector<2x32xf32>
    %cst_114 = arith.constant 1.000000e+00 : f32
    %278 = vector.broadcast %cst_114 : f32 to vector<2x32xf32>
    %279 = arith.addf %278, %277 : vector<2x32xf32>
    %280 = arith.divf %278, %279 : vector<2x32xf32>
    %cst_115 = arith.constant 2.000000e+00 : f32
    %281 = vector.broadcast %cst_115 : f32 to vector<2x32xf32>
    %282 = arith.mulf %281, %280 : vector<2x32xf32>
    %cst_116 = arith.constant 1.000000e+00 : f32
    %283 = vector.broadcast %cst_116 : f32 to vector<2x32xf32>
    %284 = arith.subf %282, %283 : vector<2x32xf32>
    %285 = arith.mulf %270, %284 : vector<2x32xf32>
    %c0_117 = arith.constant 0 : index
    %c7 = arith.constant 7 : index
    %286 = memref.load %arg0[%c0_117, %c7] : memref<2x8xi32, #tpu.memory_space<smem>>
    %c0_i32_118 = arith.constant 0 : i32
    %287 = arith.addi %c0_i32_118, %286 : i32
    %288 = arith.index_cast %287 : i32 to index
    %c0_119 = arith.constant 0 : index
    %289 = vector.load %arg2[%288, %c0_119] : memref<224x128xf32, #tpu.memory_space<vmem>>, vector<1x128xf32>
    %c1_120 = arith.constant 1 : index
    %c7_121 = arith.constant 7 : index
    %290 = memref.load %arg0[%c1_120, %c7_121] : memref<2x8xi32, #tpu.memory_space<smem>>
    %c0_i32_122 = arith.constant 0 : i32
    %291 = arith.addi %c0_i32_122, %290 : i32
    %292 = arith.index_cast %291 : i32 to index
    %c0_123 = arith.constant 0 : index
    %293 = vector.load %arg2[%292, %c0_123] : memref<224x128xf32, #tpu.memory_space<vmem>>, vector<1x128xf32>
    %294 = tpu.concatenate %289, %293 in 0 : vector<1x128xf32>, vector<1x128xf32> -> vector<2x128xf32>
    %cst_124 = arith.constant dense<0.000000e+00> : vector<2x128xf32>
    %295 = tpu.matmul %285, %0, %cst_124 {dimension_numbers = #tpu.dot_dimension_numbers<[1], [0], [0], [1], [0, 0, 1, 1], [], []>} : vector<2x32xf32>, vector<32x128xf32>, vector<2x128xf32> -> vector<2x128xf32>
    %296 = arith.addf %294, %295 : vector<2x128xf32>
    %297 = arith.negf %296 : vector<2x128xf32>
    %298 = math.exp %297 : vector<2x128xf32>
    %cst_125 = arith.constant 1.000000e+00 : f32
    %299 = vector.broadcast %cst_125 : f32 to vector<2x128xf32>
    %300 = arith.addf %299, %298 : vector<2x128xf32>
    %301 = arith.divf %299, %300 : vector<2x128xf32>
    %302 = vector.extract_strided_slice %301 {offsets = [0, 0], sizes = [2, 32], strides = [1, 1]} : vector<2x128xf32> to vector<2x32xf32>
    %303 = vector.extract_strided_slice %301 {offsets = [0, 32], sizes = [2, 32], strides = [1, 1]} : vector<2x128xf32> to vector<2x32xf32>
    %304 = vector.extract_strided_slice %301 {offsets = [0, 64], sizes = [2, 32], strides = [1, 1]} : vector<2x128xf32> to vector<2x32xf32>
    %cst_126 = arith.constant 2.000000e+00 : f32
    %305 = vector.broadcast %cst_126 : f32 to vector<2x32xf32>
    %306 = arith.mulf %305, %304 : vector<2x32xf32>
    %cst_127 = arith.constant 1.000000e+00 : f32
    %307 = vector.broadcast %cst_127 : f32 to vector<2x32xf32>
    %308 = arith.subf %306, %307 : vector<2x32xf32>
    %309 = vector.extract_strided_slice %301 {offsets = [0, 96], sizes = [2, 32], strides = [1, 1]} : vector<2x128xf32> to vector<2x32xf32>
    %310 = arith.mulf %303, %273 : vector<2x32xf32>
    %311 = arith.mulf %302, %308 : vector<2x32xf32>
    %312 = arith.addf %310, %311 : vector<2x32xf32>
    %cst_128 = arith.constant 2.000000e+00 : f32
    %313 = vector.broadcast %cst_128 : f32 to vector<2x32xf32>
    %314 = arith.mulf %313, %312 : vector<2x32xf32>
    %315 = arith.negf %314 : vector<2x32xf32>
    %316 = math.exp %315 : vector<2x32xf32>
    %cst_129 = arith.constant 1.000000e+00 : f32
    %317 = vector.broadcast %cst_129 : f32 to vector<2x32xf32>
    %318 = arith.addf %317, %316 : vector<2x32xf32>
    %319 = arith.divf %317, %318 : vector<2x32xf32>
    %cst_130 = arith.constant 2.000000e+00 : f32
    %320 = vector.broadcast %cst_130 : f32 to vector<2x32xf32>
    %321 = arith.mulf %320, %319 : vector<2x32xf32>
    %cst_131 = arith.constant 1.000000e+00 : f32
    %322 = vector.broadcast %cst_131 : f32 to vector<2x32xf32>
    %323 = arith.subf %321, %322 : vector<2x32xf32>
    %324 = arith.mulf %309, %323 : vector<2x32xf32>
    %cst_132 = arith.constant dense<0.000000e+00> : vector<2x128xf32>
    %325 = tpu.matmul %324, %1, %cst_132 {dimension_numbers = #tpu.dot_dimension_numbers<[1], [0], [0], [1], [0, 0, 1, 1], [], []>} : vector<2x32xf32>, vector<32x128xf32>, vector<2x128xf32> -> vector<2x128xf32>
    %326 = vector.broadcast %2 : vector<1x128xf32> to vector<2x128xf32>
    %327 = arith.addf %325, %326 : vector<2x128xf32>
    %328 = vector.extract_strided_slice %327 {offsets = [0, 0], sizes = [2, 16], strides = [1, 1]} : vector<2x128xf32> to vector<2x16xf32>
    %329 = vector.extract_strided_slice %327 {offsets = [0, 16], sizes = [2, 16], strides = [1, 1]} : vector<2x128xf32> to vector<2x16xf32>
    %cst_133 = arith.constant 5.000000e-01 : f32
    %330 = vector.broadcast %cst_133 : f32 to vector<2x16xf32>
    %331 = arith.mulf %330, %329 : vector<2x16xf32>
    %332 = math.exp %331 : vector<2x16xf32>
    %333 = arith.mulf %10, %332 : vector<2x16xf32>
    %334 = arith.addf %328, %333 : vector<2x16xf32>
    %cst_134 = arith.constant dense<0.000000e+00> : vector<2x128xf32>
    %335 = tpu.matmul %334, %3, %cst_134 {dimension_numbers = #tpu.dot_dimension_numbers<[1], [0], [0], [1], [0, 0, 1, 1], [], []>} : vector<2x16xf32>, vector<16x128xf32>, vector<2x128xf32> -> vector<2x128xf32>
    %336 = vector.broadcast %5 : vector<1x128xf32> to vector<2x128xf32>
    %337 = arith.addf %335, %336 : vector<2x128xf32>
    %cst_135 = arith.constant 0.000000e+00 : f32
    %338 = vector.broadcast %cst_135 : f32 to vector<2x32xf32>
    %cst_136 = arith.constant 0.000000e+00 : f32
    %339 = vector.broadcast %cst_136 : f32 to vector<2x32xf32>
    %cst_137 = arith.constant dense<0.000000e+00> : vector<2x128xf32>
    %340 = tpu.matmul %338, %4, %cst_137 {dimension_numbers = #tpu.dot_dimension_numbers<[1], [0], [0], [1], [0, 0, 1, 1], [], []>} : vector<2x32xf32>, vector<32x128xf32>, vector<2x128xf32> -> vector<2x128xf32>
    %341 = arith.addf %337, %340 : vector<2x128xf32>
    %342 = arith.negf %341 : vector<2x128xf32>
    %343 = math.exp %342 : vector<2x128xf32>
    %cst_138 = arith.constant 1.000000e+00 : f32
    %344 = vector.broadcast %cst_138 : f32 to vector<2x128xf32>
    %345 = arith.addf %344, %343 : vector<2x128xf32>
    %346 = arith.divf %344, %345 : vector<2x128xf32>
    %347 = vector.extract_strided_slice %346 {offsets = [0, 0], sizes = [2, 32], strides = [1, 1]} : vector<2x128xf32> to vector<2x32xf32>
    %348 = vector.extract_strided_slice %346 {offsets = [0, 32], sizes = [2, 32], strides = [1, 1]} : vector<2x128xf32> to vector<2x32xf32>
    %349 = vector.extract_strided_slice %346 {offsets = [0, 64], sizes = [2, 32], strides = [1, 1]} : vector<2x128xf32> to vector<2x32xf32>
    %cst_139 = arith.constant 2.000000e+00 : f32
    %350 = vector.broadcast %cst_139 : f32 to vector<2x32xf32>
    %351 = arith.mulf %350, %349 : vector<2x32xf32>
    %cst_140 = arith.constant 1.000000e+00 : f32
    %352 = vector.broadcast %cst_140 : f32 to vector<2x32xf32>
    %353 = arith.subf %351, %352 : vector<2x32xf32>
    %354 = vector.extract_strided_slice %346 {offsets = [0, 96], sizes = [2, 32], strides = [1, 1]} : vector<2x128xf32> to vector<2x32xf32>
    %355 = arith.mulf %348, %339 : vector<2x32xf32>
    %356 = arith.mulf %347, %353 : vector<2x32xf32>
    %357 = arith.addf %355, %356 : vector<2x32xf32>
    %cst_141 = arith.constant 2.000000e+00 : f32
    %358 = vector.broadcast %cst_141 : f32 to vector<2x32xf32>
    %359 = arith.mulf %358, %357 : vector<2x32xf32>
    %360 = arith.negf %359 : vector<2x32xf32>
    %361 = math.exp %360 : vector<2x32xf32>
    %cst_142 = arith.constant 1.000000e+00 : f32
    %362 = vector.broadcast %cst_142 : f32 to vector<2x32xf32>
    %363 = arith.addf %362, %361 : vector<2x32xf32>
    %364 = arith.divf %362, %363 : vector<2x32xf32>
    %cst_143 = arith.constant 2.000000e+00 : f32
    %365 = vector.broadcast %cst_143 : f32 to vector<2x32xf32>
    %366 = arith.mulf %365, %364 : vector<2x32xf32>
    %cst_144 = arith.constant 1.000000e+00 : f32
    %367 = vector.broadcast %cst_144 : f32 to vector<2x32xf32>
    %368 = arith.subf %366, %367 : vector<2x32xf32>
    %369 = arith.mulf %354, %368 : vector<2x32xf32>
    %cst_145 = arith.constant dense<0.000000e+00> : vector<2x128xf32>
    %370 = tpu.matmul %369, %4, %cst_145 {dimension_numbers = #tpu.dot_dimension_numbers<[1], [0], [0], [1], [0, 0, 1, 1], [], []>} : vector<2x32xf32>, vector<32x128xf32>, vector<2x128xf32> -> vector<2x128xf32>
    %371 = arith.addf %337, %370 : vector<2x128xf32>
    %372 = arith.negf %371 : vector<2x128xf32>
    %373 = math.exp %372 : vector<2x128xf32>
    %cst_146 = arith.constant 1.000000e+00 : f32
    %374 = vector.broadcast %cst_146 : f32 to vector<2x128xf32>
    %375 = arith.addf %374, %373 : vector<2x128xf32>
    %376 = arith.divf %374, %375 : vector<2x128xf32>
    %377 = vector.extract_strided_slice %376 {offsets = [0, 0], sizes = [2, 32], strides = [1, 1]} : vector<2x128xf32> to vector<2x32xf32>
    %378 = vector.extract_strided_slice %376 {offsets = [0, 32], sizes = [2, 32], strides = [1, 1]} : vector<2x128xf32> to vector<2x32xf32>
    %379 = vector.extract_strided_slice %376 {offsets = [0, 64], sizes = [2, 32], strides = [1, 1]} : vector<2x128xf32> to vector<2x32xf32>
    %cst_147 = arith.constant 2.000000e+00 : f32
    %380 = vector.broadcast %cst_147 : f32 to vector<2x32xf32>
    %381 = arith.mulf %380, %379 : vector<2x32xf32>
    %cst_148 = arith.constant 1.000000e+00 : f32
    %382 = vector.broadcast %cst_148 : f32 to vector<2x32xf32>
    %383 = arith.subf %381, %382 : vector<2x32xf32>
    %384 = vector.extract_strided_slice %376 {offsets = [0, 96], sizes = [2, 32], strides = [1, 1]} : vector<2x128xf32> to vector<2x32xf32>
    %385 = arith.mulf %378, %357 : vector<2x32xf32>
    %386 = arith.mulf %377, %383 : vector<2x32xf32>
    %387 = arith.addf %385, %386 : vector<2x32xf32>
    %cst_149 = arith.constant 2.000000e+00 : f32
    %388 = vector.broadcast %cst_149 : f32 to vector<2x32xf32>
    %389 = arith.mulf %388, %387 : vector<2x32xf32>
    %390 = arith.negf %389 : vector<2x32xf32>
    %391 = math.exp %390 : vector<2x32xf32>
    %cst_150 = arith.constant 1.000000e+00 : f32
    %392 = vector.broadcast %cst_150 : f32 to vector<2x32xf32>
    %393 = arith.addf %392, %391 : vector<2x32xf32>
    %394 = arith.divf %392, %393 : vector<2x32xf32>
    %cst_151 = arith.constant 2.000000e+00 : f32
    %395 = vector.broadcast %cst_151 : f32 to vector<2x32xf32>
    %396 = arith.mulf %395, %394 : vector<2x32xf32>
    %cst_152 = arith.constant 1.000000e+00 : f32
    %397 = vector.broadcast %cst_152 : f32 to vector<2x32xf32>
    %398 = arith.subf %396, %397 : vector<2x32xf32>
    %399 = arith.mulf %384, %398 : vector<2x32xf32>
    %cst_153 = arith.constant dense<0.000000e+00> : vector<2x128xf32>
    %400 = tpu.matmul %399, %4, %cst_153 {dimension_numbers = #tpu.dot_dimension_numbers<[1], [0], [0], [1], [0, 0, 1, 1], [], []>} : vector<2x32xf32>, vector<32x128xf32>, vector<2x128xf32> -> vector<2x128xf32>
    %401 = arith.addf %337, %400 : vector<2x128xf32>
    %402 = arith.negf %401 : vector<2x128xf32>
    %403 = math.exp %402 : vector<2x128xf32>
    %cst_154 = arith.constant 1.000000e+00 : f32
    %404 = vector.broadcast %cst_154 : f32 to vector<2x128xf32>
    %405 = arith.addf %404, %403 : vector<2x128xf32>
    %406 = arith.divf %404, %405 : vector<2x128xf32>
    %407 = vector.extract_strided_slice %406 {offsets = [0, 0], sizes = [2, 32], strides = [1, 1]} : vector<2x128xf32> to vector<2x32xf32>
    %408 = vector.extract_strided_slice %406 {offsets = [0, 32], sizes = [2, 32], strides = [1, 1]} : vector<2x128xf32> to vector<2x32xf32>
    %409 = vector.extract_strided_slice %406 {offsets = [0, 64], sizes = [2, 32], strides = [1, 1]} : vector<2x128xf32> to vector<2x32xf32>
    %cst_155 = arith.constant 2.000000e+00 : f32
    %410 = vector.broadcast %cst_155 : f32 to vector<2x32xf32>
    %411 = arith.mulf %410, %409 : vector<2x32xf32>
    %cst_156 = arith.constant 1.000000e+00 : f32
    %412 = vector.broadcast %cst_156 : f32 to vector<2x32xf32>
    %413 = arith.subf %411, %412 : vector<2x32xf32>
    %414 = vector.extract_strided_slice %406 {offsets = [0, 96], sizes = [2, 32], strides = [1, 1]} : vector<2x128xf32> to vector<2x32xf32>
    %415 = arith.mulf %408, %387 : vector<2x32xf32>
    %416 = arith.mulf %407, %413 : vector<2x32xf32>
    %417 = arith.addf %415, %416 : vector<2x32xf32>
    %cst_157 = arith.constant 2.000000e+00 : f32
    %418 = vector.broadcast %cst_157 : f32 to vector<2x32xf32>
    %419 = arith.mulf %418, %417 : vector<2x32xf32>
    %420 = arith.negf %419 : vector<2x32xf32>
    %421 = math.exp %420 : vector<2x32xf32>
    %cst_158 = arith.constant 1.000000e+00 : f32
    %422 = vector.broadcast %cst_158 : f32 to vector<2x32xf32>
    %423 = arith.addf %422, %421 : vector<2x32xf32>
    %424 = arith.divf %422, %423 : vector<2x32xf32>
    %cst_159 = arith.constant 2.000000e+00 : f32
    %425 = vector.broadcast %cst_159 : f32 to vector<2x32xf32>
    %426 = arith.mulf %425, %424 : vector<2x32xf32>
    %cst_160 = arith.constant 1.000000e+00 : f32
    %427 = vector.broadcast %cst_160 : f32 to vector<2x32xf32>
    %428 = arith.subf %426, %427 : vector<2x32xf32>
    %429 = arith.mulf %414, %428 : vector<2x32xf32>
    %cst_161 = arith.constant dense<0.000000e+00> : vector<2x128xf32>
    %430 = tpu.matmul %429, %4, %cst_161 {dimension_numbers = #tpu.dot_dimension_numbers<[1], [0], [0], [1], [0, 0, 1, 1], [], []>} : vector<2x32xf32>, vector<32x128xf32>, vector<2x128xf32> -> vector<2x128xf32>
    %431 = arith.addf %337, %430 : vector<2x128xf32>
    %432 = arith.negf %431 : vector<2x128xf32>
    %433 = math.exp %432 : vector<2x128xf32>
    %cst_162 = arith.constant 1.000000e+00 : f32
    %434 = vector.broadcast %cst_162 : f32 to vector<2x128xf32>
    %435 = arith.addf %434, %433 : vector<2x128xf32>
    %436 = arith.divf %434, %435 : vector<2x128xf32>
    %437 = vector.extract_strided_slice %436 {offsets = [0, 0], sizes = [2, 32], strides = [1, 1]} : vector<2x128xf32> to vector<2x32xf32>
    %438 = vector.extract_strided_slice %436 {offsets = [0, 32], sizes = [2, 32], strides = [1, 1]} : vector<2x128xf32> to vector<2x32xf32>
    %439 = vector.extract_strided_slice %436 {offsets = [0, 64], sizes = [2, 32], strides = [1, 1]} : vector<2x128xf32> to vector<2x32xf32>
    %cst_163 = arith.constant 2.000000e+00 : f32
    %440 = vector.broadcast %cst_163 : f32 to vector<2x32xf32>
    %441 = arith.mulf %440, %439 : vector<2x32xf32>
    %cst_164 = arith.constant 1.000000e+00 : f32
    %442 = vector.broadcast %cst_164 : f32 to vector<2x32xf32>
    %443 = arith.subf %441, %442 : vector<2x32xf32>
    %444 = vector.extract_strided_slice %436 {offsets = [0, 96], sizes = [2, 32], strides = [1, 1]} : vector<2x128xf32> to vector<2x32xf32>
    %445 = arith.mulf %438, %417 : vector<2x32xf32>
    %446 = arith.mulf %437, %443 : vector<2x32xf32>
    %447 = arith.addf %445, %446 : vector<2x32xf32>
    %cst_165 = arith.constant 2.000000e+00 : f32
    %448 = vector.broadcast %cst_165 : f32 to vector<2x32xf32>
    %449 = arith.mulf %448, %447 : vector<2x32xf32>
    %450 = arith.negf %449 : vector<2x32xf32>
    %451 = math.exp %450 : vector<2x32xf32>
    %cst_166 = arith.constant 1.000000e+00 : f32
    %452 = vector.broadcast %cst_166 : f32 to vector<2x32xf32>
    %453 = arith.addf %452, %451 : vector<2x32xf32>
    %454 = arith.divf %452, %453 : vector<2x32xf32>
    %cst_167 = arith.constant 2.000000e+00 : f32
    %455 = vector.broadcast %cst_167 : f32 to vector<2x32xf32>
    %456 = arith.mulf %455, %454 : vector<2x32xf32>
    %cst_168 = arith.constant 1.000000e+00 : f32
    %457 = vector.broadcast %cst_168 : f32 to vector<2x32xf32>
    %458 = arith.subf %456, %457 : vector<2x32xf32>
    %459 = arith.mulf %444, %458 : vector<2x32xf32>
    %cst_169 = arith.constant dense<0.000000e+00> : vector<2x128xf32>
    %460 = tpu.matmul %459, %4, %cst_169 {dimension_numbers = #tpu.dot_dimension_numbers<[1], [0], [0], [1], [0, 0, 1, 1], [], []>} : vector<2x32xf32>, vector<32x128xf32>, vector<2x128xf32> -> vector<2x128xf32>
    %461 = arith.addf %337, %460 : vector<2x128xf32>
    %462 = arith.negf %461 : vector<2x128xf32>
    %463 = math.exp %462 : vector<2x128xf32>
    %cst_170 = arith.constant 1.000000e+00 : f32
    %464 = vector.broadcast %cst_170 : f32 to vector<2x128xf32>
    %465 = arith.addf %464, %463 : vector<2x128xf32>
    %466 = arith.divf %464, %465 : vector<2x128xf32>
    %467 = vector.extract_strided_slice %466 {offsets = [0, 0], sizes = [2, 32], strides = [1, 1]} : vector<2x128xf32> to vector<2x32xf32>
    %468 = vector.extract_strided_slice %466 {offsets = [0, 32], sizes = [2, 32], strides = [1, 1]} : vector<2x128xf32> to vector<2x32xf32>
    %469 = vector.extract_strided_slice %466 {offsets = [0, 64], sizes = [2, 32], strides = [1, 1]} : vector<2x128xf32> to vector<2x32xf32>
    %cst_171 = arith.constant 2.000000e+00 : f32
    %470 = vector.broadcast %cst_171 : f32 to vector<2x32xf32>
    %471 = arith.mulf %470, %469 : vector<2x32xf32>
    %cst_172 = arith.constant 1.000000e+00 : f32
    %472 = vector.broadcast %cst_172 : f32 to vector<2x32xf32>
    %473 = arith.subf %471, %472 : vector<2x32xf32>
    %474 = vector.extract_strided_slice %466 {offsets = [0, 96], sizes = [2, 32], strides = [1, 1]} : vector<2x128xf32> to vector<2x32xf32>
    %475 = arith.mulf %468, %447 : vector<2x32xf32>
    %476 = arith.mulf %467, %473 : vector<2x32xf32>
    %477 = arith.addf %475, %476 : vector<2x32xf32>
    %cst_173 = arith.constant 2.000000e+00 : f32
    %478 = vector.broadcast %cst_173 : f32 to vector<2x32xf32>
    %479 = arith.mulf %478, %477 : vector<2x32xf32>
    %480 = arith.negf %479 : vector<2x32xf32>
    %481 = math.exp %480 : vector<2x32xf32>
    %cst_174 = arith.constant 1.000000e+00 : f32
    %482 = vector.broadcast %cst_174 : f32 to vector<2x32xf32>
    %483 = arith.addf %482, %481 : vector<2x32xf32>
    %484 = arith.divf %482, %483 : vector<2x32xf32>
    %cst_175 = arith.constant 2.000000e+00 : f32
    %485 = vector.broadcast %cst_175 : f32 to vector<2x32xf32>
    %486 = arith.mulf %485, %484 : vector<2x32xf32>
    %cst_176 = arith.constant 1.000000e+00 : f32
    %487 = vector.broadcast %cst_176 : f32 to vector<2x32xf32>
    %488 = arith.subf %486, %487 : vector<2x32xf32>
    %489 = arith.mulf %474, %488 : vector<2x32xf32>
    %cst_177 = arith.constant dense<0.000000e+00> : vector<2x128xf32>
    %490 = tpu.matmul %489, %4, %cst_177 {dimension_numbers = #tpu.dot_dimension_numbers<[1], [0], [0], [1], [0, 0, 1, 1], [], []>} : vector<2x32xf32>, vector<32x128xf32>, vector<2x128xf32> -> vector<2x128xf32>
    %491 = arith.addf %337, %490 : vector<2x128xf32>
    %492 = arith.negf %491 : vector<2x128xf32>
    %493 = math.exp %492 : vector<2x128xf32>
    %cst_178 = arith.constant 1.000000e+00 : f32
    %494 = vector.broadcast %cst_178 : f32 to vector<2x128xf32>
    %495 = arith.addf %494, %493 : vector<2x128xf32>
    %496 = arith.divf %494, %495 : vector<2x128xf32>
    %497 = vector.extract_strided_slice %496 {offsets = [0, 0], sizes = [2, 32], strides = [1, 1]} : vector<2x128xf32> to vector<2x32xf32>
    %498 = vector.extract_strided_slice %496 {offsets = [0, 32], sizes = [2, 32], strides = [1, 1]} : vector<2x128xf32> to vector<2x32xf32>
    %499 = vector.extract_strided_slice %496 {offsets = [0, 64], sizes = [2, 32], strides = [1, 1]} : vector<2x128xf32> to vector<2x32xf32>
    %cst_179 = arith.constant 2.000000e+00 : f32
    %500 = vector.broadcast %cst_179 : f32 to vector<2x32xf32>
    %501 = arith.mulf %500, %499 : vector<2x32xf32>
    %cst_180 = arith.constant 1.000000e+00 : f32
    %502 = vector.broadcast %cst_180 : f32 to vector<2x32xf32>
    %503 = arith.subf %501, %502 : vector<2x32xf32>
    %504 = vector.extract_strided_slice %496 {offsets = [0, 96], sizes = [2, 32], strides = [1, 1]} : vector<2x128xf32> to vector<2x32xf32>
    %505 = arith.mulf %498, %477 : vector<2x32xf32>
    %506 = arith.mulf %497, %503 : vector<2x32xf32>
    %507 = arith.addf %505, %506 : vector<2x32xf32>
    %cst_181 = arith.constant 2.000000e+00 : f32
    %508 = vector.broadcast %cst_181 : f32 to vector<2x32xf32>
    %509 = arith.mulf %508, %507 : vector<2x32xf32>
    %510 = arith.negf %509 : vector<2x32xf32>
    %511 = math.exp %510 : vector<2x32xf32>
    %cst_182 = arith.constant 1.000000e+00 : f32
    %512 = vector.broadcast %cst_182 : f32 to vector<2x32xf32>
    %513 = arith.addf %512, %511 : vector<2x32xf32>
    %514 = arith.divf %512, %513 : vector<2x32xf32>
    %cst_183 = arith.constant 2.000000e+00 : f32
    %515 = vector.broadcast %cst_183 : f32 to vector<2x32xf32>
    %516 = arith.mulf %515, %514 : vector<2x32xf32>
    %cst_184 = arith.constant 1.000000e+00 : f32
    %517 = vector.broadcast %cst_184 : f32 to vector<2x32xf32>
    %518 = arith.subf %516, %517 : vector<2x32xf32>
    %519 = arith.mulf %504, %518 : vector<2x32xf32>
    %cst_185 = arith.constant dense<0.000000e+00> : vector<2x128xf32>
    %520 = tpu.matmul %519, %4, %cst_185 {dimension_numbers = #tpu.dot_dimension_numbers<[1], [0], [0], [1], [0, 0, 1, 1], [], []>} : vector<2x32xf32>, vector<32x128xf32>, vector<2x128xf32> -> vector<2x128xf32>
    %521 = arith.addf %337, %520 : vector<2x128xf32>
    %522 = arith.negf %521 : vector<2x128xf32>
    %523 = math.exp %522 : vector<2x128xf32>
    %cst_186 = arith.constant 1.000000e+00 : f32
    %524 = vector.broadcast %cst_186 : f32 to vector<2x128xf32>
    %525 = arith.addf %524, %523 : vector<2x128xf32>
    %526 = arith.divf %524, %525 : vector<2x128xf32>
    %527 = vector.extract_strided_slice %526 {offsets = [0, 0], sizes = [2, 32], strides = [1, 1]} : vector<2x128xf32> to vector<2x32xf32>
    %528 = vector.extract_strided_slice %526 {offsets = [0, 32], sizes = [2, 32], strides = [1, 1]} : vector<2x128xf32> to vector<2x32xf32>
    %529 = vector.extract_strided_slice %526 {offsets = [0, 64], sizes = [2, 32], strides = [1, 1]} : vector<2x128xf32> to vector<2x32xf32>
    %cst_187 = arith.constant 2.000000e+00 : f32
    %530 = vector.broadcast %cst_187 : f32 to vector<2x32xf32>
    %531 = arith.mulf %530, %529 : vector<2x32xf32>
    %cst_188 = arith.constant 1.000000e+00 : f32
    %532 = vector.broadcast %cst_188 : f32 to vector<2x32xf32>
    %533 = arith.subf %531, %532 : vector<2x32xf32>
    %534 = vector.extract_strided_slice %526 {offsets = [0, 96], sizes = [2, 32], strides = [1, 1]} : vector<2x128xf32> to vector<2x32xf32>
    %535 = arith.mulf %528, %507 : vector<2x32xf32>
    %536 = arith.mulf %527, %533 : vector<2x32xf32>
    %537 = arith.addf %535, %536 : vector<2x32xf32>
    %cst_189 = arith.constant 2.000000e+00 : f32
    %538 = vector.broadcast %cst_189 : f32 to vector<2x32xf32>
    %539 = arith.mulf %538, %537 : vector<2x32xf32>
    %540 = arith.negf %539 : vector<2x32xf32>
    %541 = math.exp %540 : vector<2x32xf32>
    %cst_190 = arith.constant 1.000000e+00 : f32
    %542 = vector.broadcast %cst_190 : f32 to vector<2x32xf32>
    %543 = arith.addf %542, %541 : vector<2x32xf32>
    %544 = arith.divf %542, %543 : vector<2x32xf32>
    %cst_191 = arith.constant 2.000000e+00 : f32
    %545 = vector.broadcast %cst_191 : f32 to vector<2x32xf32>
    %546 = arith.mulf %545, %544 : vector<2x32xf32>
    %cst_192 = arith.constant 1.000000e+00 : f32
    %547 = vector.broadcast %cst_192 : f32 to vector<2x32xf32>
    %548 = arith.subf %546, %547 : vector<2x32xf32>
    %549 = arith.mulf %534, %548 : vector<2x32xf32>
    %cst_193 = arith.constant dense<0.000000e+00> : vector<2x128xf32>
    %550 = tpu.matmul %549, %4, %cst_193 {dimension_numbers = #tpu.dot_dimension_numbers<[1], [0], [0], [1], [0, 0, 1, 1], [], []>} : vector<2x32xf32>, vector<32x128xf32>, vector<2x128xf32> -> vector<2x128xf32>
    %551 = arith.addf %337, %550 : vector<2x128xf32>
    %552 = arith.negf %551 : vector<2x128xf32>
    %553 = math.exp %552 : vector<2x128xf32>
    %cst_194 = arith.constant 1.000000e+00 : f32
    %554 = vector.broadcast %cst_194 : f32 to vector<2x128xf32>
    %555 = arith.addf %554, %553 : vector<2x128xf32>
    %556 = arith.divf %554, %555 : vector<2x128xf32>
    %557 = vector.extract_strided_slice %556 {offsets = [0, 0], sizes = [2, 32], strides = [1, 1]} : vector<2x128xf32> to vector<2x32xf32>
    %558 = vector.extract_strided_slice %556 {offsets = [0, 32], sizes = [2, 32], strides = [1, 1]} : vector<2x128xf32> to vector<2x32xf32>
    %559 = vector.extract_strided_slice %556 {offsets = [0, 64], sizes = [2, 32], strides = [1, 1]} : vector<2x128xf32> to vector<2x32xf32>
    %cst_195 = arith.constant 2.000000e+00 : f32
    %560 = vector.broadcast %cst_195 : f32 to vector<2x32xf32>
    %561 = arith.mulf %560, %559 : vector<2x32xf32>
    %cst_196 = arith.constant 1.000000e+00 : f32
    %562 = vector.broadcast %cst_196 : f32 to vector<2x32xf32>
    %563 = arith.subf %561, %562 : vector<2x32xf32>
    %564 = vector.extract_strided_slice %556 {offsets = [0, 96], sizes = [2, 32], strides = [1, 1]} : vector<2x128xf32> to vector<2x32xf32>
    %565 = arith.mulf %558, %537 : vector<2x32xf32>
    %566 = arith.mulf %557, %563 : vector<2x32xf32>
    %567 = arith.addf %565, %566 : vector<2x32xf32>
    %cst_197 = arith.constant 2.000000e+00 : f32
    %568 = vector.broadcast %cst_197 : f32 to vector<2x32xf32>
    %569 = arith.mulf %568, %567 : vector<2x32xf32>
    %570 = arith.negf %569 : vector<2x32xf32>
    %571 = math.exp %570 : vector<2x32xf32>
    %cst_198 = arith.constant 1.000000e+00 : f32
    %572 = vector.broadcast %cst_198 : f32 to vector<2x32xf32>
    %573 = arith.addf %572, %571 : vector<2x32xf32>
    %574 = arith.divf %572, %573 : vector<2x32xf32>
    %cst_199 = arith.constant 2.000000e+00 : f32
    %575 = vector.broadcast %cst_199 : f32 to vector<2x32xf32>
    %576 = arith.mulf %575, %574 : vector<2x32xf32>
    %cst_200 = arith.constant 1.000000e+00 : f32
    %577 = vector.broadcast %cst_200 : f32 to vector<2x32xf32>
    %578 = arith.subf %576, %577 : vector<2x32xf32>
    %579 = arith.mulf %564, %578 : vector<2x32xf32>
    %580 = vector.extract_strided_slice %369 {offsets = [0, 0], sizes = [1, 32], strides = [1, 1]} : vector<2x32xf32> to vector<1x32xf32>
    %581 = vector.extract_strided_slice %399 {offsets = [0, 0], sizes = [1, 32], strides = [1, 1]} : vector<2x32xf32> to vector<1x32xf32>
    %582 = vector.extract_strided_slice %429 {offsets = [0, 0], sizes = [1, 32], strides = [1, 1]} : vector<2x32xf32> to vector<1x32xf32>
    %583 = vector.extract_strided_slice %459 {offsets = [0, 0], sizes = [1, 32], strides = [1, 1]} : vector<2x32xf32> to vector<1x32xf32>
    %584 = vector.extract_strided_slice %489 {offsets = [0, 0], sizes = [1, 32], strides = [1, 1]} : vector<2x32xf32> to vector<1x32xf32>
    %585 = vector.extract_strided_slice %519 {offsets = [0, 0], sizes = [1, 32], strides = [1, 1]} : vector<2x32xf32> to vector<1x32xf32>
    %586 = vector.extract_strided_slice %549 {offsets = [0, 0], sizes = [1, 32], strides = [1, 1]} : vector<2x32xf32> to vector<1x32xf32>
    %587 = vector.extract_strided_slice %579 {offsets = [0, 0], sizes = [1, 32], strides = [1, 1]} : vector<2x32xf32> to vector<1x32xf32>
    %588 = vector.extract_strided_slice %369 {offsets = [1, 0], sizes = [1, 32], strides = [1, 1]} : vector<2x32xf32> to vector<1x32xf32>
    %589 = vector.extract_strided_slice %399 {offsets = [1, 0], sizes = [1, 32], strides = [1, 1]} : vector<2x32xf32> to vector<1x32xf32>
    %590 = vector.extract_strided_slice %429 {offsets = [1, 0], sizes = [1, 32], strides = [1, 1]} : vector<2x32xf32> to vector<1x32xf32>
    %591 = vector.extract_strided_slice %459 {offsets = [1, 0], sizes = [1, 32], strides = [1, 1]} : vector<2x32xf32> to vector<1x32xf32>
    %592 = vector.extract_strided_slice %489 {offsets = [1, 0], sizes = [1, 32], strides = [1, 1]} : vector<2x32xf32> to vector<1x32xf32>
    %593 = vector.extract_strided_slice %519 {offsets = [1, 0], sizes = [1, 32], strides = [1, 1]} : vector<2x32xf32> to vector<1x32xf32>
    %594 = vector.extract_strided_slice %549 {offsets = [1, 0], sizes = [1, 32], strides = [1, 1]} : vector<2x32xf32> to vector<1x32xf32>
    %595 = vector.extract_strided_slice %579 {offsets = [1, 0], sizes = [1, 32], strides = [1, 1]} : vector<2x32xf32> to vector<1x32xf32>
    %596 = tpu.concatenate %580, %581, %582, %583, %584, %585, %586, %587, %588, %589, %590, %591, %592, %593, %594, %595 in 0 : vector<1x32xf32>, vector<1x32xf32>, vector<1x32xf32>, vector<1x32xf32>, vector<1x32xf32>, vector<1x32xf32>, vector<1x32xf32>, vector<1x32xf32>, vector<1x32xf32>, vector<1x32xf32>, vector<1x32xf32>, vector<1x32xf32>, vector<1x32xf32>, vector<1x32xf32>, vector<1x32xf32>, vector<1x32xf32> -> vector<16x32xf32>
    %cst_201 = arith.constant dense<0.000000e+00> : vector<16x128xf32>
    %597 = tpu.matmul %596, %6, %cst_201 {dimension_numbers = #tpu.dot_dimension_numbers<[1], [0], [0], [1], [0, 0, 1, 1], [], []>} : vector<16x32xf32>, vector<32x128xf32>, vector<16x128xf32> -> vector<16x128xf32>
    %598 = vector.broadcast %7 : vector<1x128xf32> to vector<16x128xf32>
    %599 = arith.addf %597, %598 : vector<16x128xf32>
    %600 = vector.shape_cast %599 : vector<16x128xf32> to vector<2x8x128xf32>
    %c0_202 = arith.constant 0 : index
    %c0_203 = arith.constant 0 : index
    %c0_204 = arith.constant 0 : index
    %601 = vector.load %arg3[%c0_202, %c0_203, %c0_204] : memref<2x8x128xf32, #tpu.memory_space<vmem>>, vector<2x8x128xf32>
    tpu.vector_store %arg3[%c0_202, %c0_203, %c0_204], %600 {strides = array<i32>} : memref<2x8x128xf32, #tpu.memory_space<vmem>>, vector<2x8x128xf32>,
    %cst_205 = arith.constant dense<0.000000e+00> : vector<2x128xf32>
    %602 = tpu.matmul %334, %8, %cst_205 {dimension_numbers = #tpu.dot_dimension_numbers<[1], [0], [0], [1], [0, 0, 1, 1], [], []>} : vector<2x16xf32>, vector<16x128xf32>, vector<2x128xf32> -> vector<2x128xf32>
    %603 = vector.broadcast %9 : vector<1x128xf32> to vector<2x128xf32>
    %604 = arith.addf %602, %603 : vector<2x128xf32>
    %cst_206 = arith.constant 0.000000e+00 : f32
    %605 = vector.broadcast %cst_206 : f32 to vector<2x72xf32>
    %606 = vector.extract_strided_slice %327 {offsets = [0, 0], sizes = [2, 32], strides = [1, 1]} : vector<2x128xf32> to vector<2x32xf32>
    %607 = vector.extract_strided_slice %604 {offsets = [0, 0], sizes = [2, 8], strides = [1, 1]} : vector<2x128xf32> to vector<2x8xf32>
    %608 = tpu.concatenate %334, %606, %607, %605 in 1 : vector<2x16xf32>, vector<2x32xf32>, vector<2x8xf32>, vector<2x72xf32> -> vector<2x128xf32>
    %c0_207 = arith.constant 0 : index
    %c0_208 = arith.constant 0 : index
    %609 = vector.load %arg4[%c0_207, %c0_208] : memref<2x128xf32, #tpu.memory_space<vmem>>, vector<2x128xf32>
    tpu.vector_store %arg4[%c0_207, %c0_208], %608 {strides = array<i32>} : memref<2x128xf32, #tpu.memory_space<vmem>>, vector<2x128xf32>,
    return
  }
}

</mosaic_0001>

<llo_original>
// kernel: guidance_vae_forward.1
$region0: #{guidance_vae_forward.1}
  #allocation0 [shape = 'u32[]', space=smem, size = 0x4, offset = 0x4, fixed_abs, tag = 'smem constant byte address 0x4 - core index']
  #allocation1 [shape = 'u32[72,128]{1,0:T(1,128)}', space=vmem, size = 0x9000, scoped, tag = 'internal scratch']
  %s0 = inlined_call_operand.hbm [shape: s32[2,8], index: 0, kind: input, shape index: {}]
  %s1 = inlined_call_operand.hbm [shape: f32[2,16], index: 1, kind: input, shape index: {}]
  %s2 = inlined_call_operand.hbm [shape: f32[224,128], index: 2, kind: input, shape index: {}]
  %s3 = inlined_call_operand.hbm [shape: f32[2,8,128], index: 3, kind: output, shape index: {0}]
  %s4 = inlined_call_operand.vmem [shape: f32[2,128], index: 4, kind: output, shape index: {1}]
  %5 = xla_tuple %s3, %s4
  %s6 = sld [smem:[#allocation0]]
  $region42: #{guidance_vae_forward.1} parent=0
    _
  %s8 = ssub.s32 1, %s6
  %s9 = scalar_select 0, %s8, %s6
  $region1: #{guidance_vae_forward.1} parent=0
    #allocation2 [shape = 'u8[1024]{0}', space=smem, size = 0x400, scoped, tag = 'input window, operand 0, single buffered']
    #allocation3 [shape = 's32[1]{0}', space=sflag, size = 0x4, scoped, tag = 'scoped memory for guidance_vae_forward.1']
    #allocation4 [shape = 's32[1]{0}', space=sflag, size = 0x4, scoped, tag = 'scoped memory for guidance_vae_forward.1']
    #allocation5 [shape = 's32[1]{0}', space=sflag, size = 0x4, scoped, tag = 'scoped memory for guidance_vae_forward.1']
    #allocation6 [shape = 'u8[1024]{0}', space=vmem, size = 0x400, scoped, tag = 'input window, operand 1, single buffered']
    #allocation7 [shape = 'u8[114688]{0}', space=vmem, size = 0x1c000, scoped, tag = 'input window, operand 2, single buffered']
    #allocation8 [shape = 's32[1]{0}', space=sflag, size = 0x4, scoped, tag = 'scoped memory for guidance_vae_forward.1']
    #allocation9 [shape = 'u8[8192]{0}', space=vmem, size = 0x2000, scoped, tag = 'output window, operand 0, single buffered']
    %10 = vsyncpa [#allocation5], 0
    %11 = vsyncpa [#allocation3], 0
    %12 = vsyncpa [#allocation8], 0
    %13 = vsyncpa [#allocation4], 0
    // Predicated region
    $region2: #{guidance_vae_forward.1} parent=1 // pred_check
      _
    $region3: #{guidance_vae_forward.1} parent=1 // pred_check_branch
      %15 = sbr.rel (0) target = $region5
    $region4: #{guidance_vae_forward.1} parent=1 // pred_region
      %17 = vsyncadd [#allocation5], 0
      %s19 = sshll.u32 %s0, 4
      %s20 = int_to_ptr.hbm [resolvable:$true] %s19
      %22 = dma.hbm_to_smem %s20, 32, [#allocation2], [#allocation5]
    $region5: #{guidance_vae_forward.1} parent=1 // pred_fallthru
      _
    // Predicated region
    $region6: #{guidance_vae_forward.1} parent=1 // pred_check
      _
    $region7: #{guidance_vae_forward.1} parent=1 // pred_check_branch
      %24 = sbr.rel (0) target = $region9
    $region8: #{guidance_vae_forward.1} parent=1 // pred_region
      %26 = vsyncadd [#allocation3], 0
      %s28 = sshll.u32 %s1, 4
      %s29 = int_to_ptr.hbm [resolvable:$true] %s28
      %s30 = sshll.u32 [#allocation6], 4
      %s31 = int_to_ptr.vmem [resolvable:$true] %s30
      %33 = dma.hbm_to_vmem [thread:$0]  %s29, 32, %s31, [#allocation3]
    $region9: #{guidance_vae_forward.1} parent=1 // pred_fallthru
      _
    // Predicated region
    $region10: #{guidance_vae_forward.1} parent=1 // pred_check
      _
    $region11: #{guidance_vae_forward.1} parent=1 // pred_check_branch
      %35 = sbr.rel (0) target = $region13
    $region12: #{guidance_vae_forward.1} parent=1 // pred_region
      %37 = vsyncadd [#allocation8], 0
      %s38 = sshll.u32 %s2, 4
      %s39 = int_to_ptr.hbm [resolvable:$true] %s38
      %s40 = sshll.u32 [#allocation7], 4
      %s41 = int_to_ptr.vmem [resolvable:$true] %s40
      %46 = dma.hbm_to_vmem [thread:$0]  %s39, 3584, %s41, [#allocation8], 128, 128, 8
    $region13: #{guidance_vae_forward.1} parent=1 // pred_fallthru
      _
    // Predicated region
    $region14: #{guidance_vae_forward.1} parent=1 // pred_check
      _
    $region15: #{guidance_vae_forward.1} parent=1 // pred_check_branch
      %48 = sbr.rel (0) target = $region17
    $region16: #{guidance_vae_forward.1} parent=1 // pred_region
      %50 = dma.done [#allocation5], 32
    $region17: #{guidance_vae_forward.1} parent=1 // pred_fallthru
      _
    // Predicated region
    $region18: #{guidance_vae_forward.1} parent=1 // pred_check
      _
    $region19: #{guidance_vae_forward.1} parent=1 // pred_check_branch
      %52 = sbr.rel (0) target = $region21
    $region20: #{guidance_vae_forward.1} parent=1 // pred_region
      %54 = dma.done [#allocation3], 32
    $region21: #{guidance_vae_forward.1} parent=1 // pred_fallthru
      _
    // Predicated region
    $region22: #{guidance_vae_forward.1} parent=1 // pred_check
      _
    $region23: #{guidance_vae_forward.1} parent=1 // pred_check_branch
      %56 = sbr.rel (0) target = $region25
    $region24: #{guidance_vae_forward.1} parent=1 // pred_region
      %58 = dma.done [#allocation8], 3584
    $region25: #{guidance_vae_forward.1} parent=1 // pred_fallthru
      _
    %59 = sfence
    %v60 = vld [vmem:[#allocation7 + $0x20] sm:$0xff]
    %v61 = vld [vmem:[#allocation7 + $0x28] sm:$0xff]
    %v62 = vld [vmem:[#allocation7 + $0x30] sm:$0xff]
    %v63 = vld [vmem:[#allocation7 + $0x38] sm:$0xff]
    %v64 = vld [vmem:[#allocation7 + $0x40] sm:$0xff]
    %v65 = vld [vmem:[#allocation7 + $0x48] sm:$0xff]
    %v66 = vld [vmem:[#allocation7 + $0x50] sm:$0xff]
    %v67 = vld [vmem:[#allocation7 + $0x58] sm:$0xff]
    %v68 = vld [vmem:[#allocation7 + $0x60] sm:$0x1]
    %v69 = vld [vmem:[#allocation7 + $0x68] sm:$0xff]
    %v70 = vld [vmem:[#allocation7 + $0x70] sm:$0xff]
    %v71 = vld [vmem:[#allocation7 + $0x78] sm:$0xff]
    %v72 = vld [vmem:[#allocation7 + $0x80] sm:$0xff]
    %v73 = vld [vmem:[#allocation7 + $0x88] sm:$0xff]
    %v74 = vld [vmem:[#allocation7 + $0x90] sm:$0xff]
    %v75 = vld [vmem:[#allocation7 + $0x98] sm:$0x1]
    %v76 = vld [vmem:[#allocation7 + $0xa0] sm:$0xff]
    %v77 = vld [vmem:[#allocation7 + $0xa8] sm:$0xff]
    %v78 = vld [vmem:[#allocation7 + $0xb0] sm:$0xff]
    %v79 = vld [vmem:[#allocation7 + $0xb8] sm:$0xff]
    %v80 = vld [vmem:[#allocation7 + $0xc0] sm:$0x1]
    %v81 = vld [vmem:[#allocation7 + $0xc8] sm:$0xff]
    %v82 = vld [vmem:[#allocation7 + $0xd0] sm:$0xff]
    %v83 = vld [vmem:[#allocation7 + $0xd8] sm:$0x1]
    %v84 = vld [vmem:[#allocation6] sm:$0x3]
    %s85 = sld [smem:[#allocation2]]
    %s86 = scalar_lea.vmem [#allocation7], %s85
    %v87 = vld [vmem:[%s86] sm:$0x1]
    %s88 = sld [smem:[#allocation2 + $0x80]]
    %s89 = scalar_lea.vmem [#allocation7], %s88
    %v90 = vld [vmem:[%s89] sm:$0x1]
    %v92 = vrot.slane %v90, 7
    %vm94 = vcmask 1040384
    %v95 = vsel %vm94, %v87, %v92
    %vm96 = vcmask 261120
    %v98 = vsel %vm96, 0.0, 0
    %100 = vmatpush.msra.mxu0 0.0
    %101 = vmatpush.msra.mxu0 0.0
    %102 = vmatpush.msra.mxu0 0.0
    %103 = vmatpush.msra.mxu0 0.0
    %104 = vmatpush.msra.mxu0 0.0
    %105 = vmatpush.msra.mxu0 0.0
    %106 = vmatpush.msra.mxu0 0.0
    %107 = vmatpush.msra.mxu0 0.0
    %108 = vmatpush.msra.mxu0 0.0
    %109 = vmatpush.msra.mxu0 0.0
    %110 = vmatpush.msra.mxu0 0.0
    %111 = vmatpush.msra.mxu0 0.0
    %112 = vmatpush.msra.mxu0 %v63
    %113 = vmatpush.msra.mxu0 %v62
    %114 = vmatpush.msra.mxu0 %v61
    %115 = vmatpush.msra.mxu0 %v60
    %116 = vmatmul.f32.gmra.mxu0 %v98
    %v117 = vpop.f32.mrf.mxu0
    %v118 = vadd.f32 0.0, %v117
    %119 = vdwg.mxu0
    %v120 = vadd.f32 %v95, %v118
    %v121 = vxor.u32 %v120, 2147483648
    %v122 = vmul.f32 %v121, 1.442695
    %v123 = vpow.pop %v122
    %v124 = vadd.f32 %v123, 1.0
    %v125 = vrcp.pop %v124
    %v126 = vmul.f32 %v124, %v125
    %v127 = vsub.f32 1.0, %v126
    %v128 = vmul.f32 %v125, %v127
    %v129 = vadd.f32 %v125, %v128
    %vm130 = vweird.f32 %v124
    %vm131 = vweird.f32 %v125
    %vm132 = vmor %vm130, %vm131
    %v133 = vsel %vm132, %v125, %v129
    %v134 = vand.u32 2147483647, %v124
    %vm135 = vcmp.eq.f32.partialorder %v134, 8.507059e+37
    %v136 = vand.u32 %v124, 2147483648
    %v137 = vor.u32 1.1754944e-38, %v136
    %v138 = vsel %vm135, %v137, %v133
    %v139 = vmul.f32 1.0, %v138
    %v140 = vmul.f32 %v139, 2.0
    %v141 = vsub.f32 %v140, 1.0
    %v142 = vmul.f32 %v139, 0.0
    %144 = vrot.lane.b32.xlu0 %v141, 64
    %v145 = vpop.permute.xlu0 %144
    %v147 = vmul.f32 %v139, %v145
    %149 = vrot.lane.b32.xlu0 %v147, 32
    %v150 = vpop.permute.xlu0 %149
    %v152 = vadd.f32 %v142, %v150
    %v153 = vmul.f32 %v152, 2.0
    %v154 = vxor.u32 %v153, 2147483648
    %v155 = vmul.f32 %v154, 1.442695
    %v156 = vpow.pop %v155
    %v157 = vadd.f32 %v156, 1.0
    %v158 = vrcp.pop %v157
    %v159 = vmul.f32 %v157, %v158
    %v160 = vsub.f32 1.0, %v159
    %v161 = vmul.f32 %v158, %v160
    %v162 = vadd.f32 %v158, %v161
    %vm163 = vweird.f32 %v157
    %vm164 = vweird.f32 %v158
    %vm165 = vmor %vm163, %vm164
    %v166 = vsel %vm165, %v158, %v162
    %v167 = vand.u32 2147483647, %v157
    %vm168 = vcmp.eq.f32.partialorder %v167, 8.507059e+37
    %v169 = vand.u32 %v157, 2147483648
    %v170 = vor.u32 1.1754944e-38, %v169
    %v171 = vsel %vm168, %v170, %v166
    %v172 = vmul.f32 1.0, %v171
    %v173 = vmul.f32 %v172, 2.0
    %v174 = vsub.f32 %v173, 1.0
    %176 = vrot.lane.b32.xlu0 %v174, 64
    %v177 = vpop.permute.xlu0 %176
    %v179 = vmul.f32 %v139, %v177
    %s180 = sld [smem:[#allocation2 + $0x1]]
    %s181 = scalar_lea.vmem [#allocation7], %s180
    %v182 = vld [vmem:[%s181] sm:$0x1]
    %s183 = sld [smem:[#allocation2 + $0x81]]
    %s184 = scalar_lea.vmem [#allocation7], %s183
    %v185 = vld [vmem:[%s184] sm:$0x1]
    %v187 = vrot.slane %v185, 7
    %v189 = vsel %vm94, %v182, %v187
    %191 = vrot.lane.b32.xlu0 %v179, 32
    %v192 = vpop.permute.xlu0 %191
    %v193 = vsel %vm96, %v192, 0
    %195 = vmatpush.msra.mxu0 0.0
    %196 = vmatpush.msra.mxu0 0.0
    %197 = vmatpush.msra.mxu0 0.0
    %198 = vmatpush.msra.mxu0 0.0
    %199 = vmatpush.msra.mxu0 0.0
    %200 = vmatpush.msra.mxu0 0.0
    %201 = vmatpush.msra.mxu0 0.0
    %202 = vmatpush.msra.mxu0 0.0
    %203 = vmatpush.msra.mxu0 0.0
    %204 = vmatpush.msra.mxu0 0.0
    %205 = vmatpush.msra.mxu0 0.0
    %206 = vmatpush.msra.mxu0 0.0
    %207 = vmatpush.msra.mxu0 %v63
    %208 = vmatpush.msra.mxu0 %v62
    %209 = vmatpush.msra.mxu0 %v61
    %210 = vmatpush.msra.mxu0 %v60
    %211 = vmatmul.f32.gmra.mxu0 %v193
    %v212 = vpop.f32.mrf.mxu0
    %v213 = vadd.f32 0.0, %v212
    %214 = vdwg.mxu0
    %v215 = vadd.f32 %v189, %v213
    %v216 = vxor.u32 %v215, 2147483648
    %v217 = vmul.f32 %v216, 1.442695
    %v218 = vpow.pop %v217
    %v219 = vadd.f32 %v218, 1.0
    %v220 = vrcp.pop %v219
    %v221 = vmul.f32 %v219, %v220
    %v222 = vsub.f32 1.0, %v221
    %v223 = vmul.f32 %v220, %v222
    %v224 = vadd.f32 %v220, %v223
    %vm225 = vweird.f32 %v219
    %vm226 = vweird.f32 %v220
    %vm227 = vmor %vm225, %vm226
    %v228 = vsel %vm227, %v220, %v224
    %v229 = vand.u32 2147483647, %v219
    %vm230 = vcmp.eq.f32.partialorder %v229, 8.507059e+37
    %v231 = vand.u32 %v219, 2147483648
    %v232 = vor.u32 1.1754944e-38, %v231
    %v233 = vsel %vm230, %v232, %v228
    %v234 = vmul.f32 1.0, %v233
    %v235 = vmul.f32 %v234, 2.0
    %v236 = vsub.f32 %v235, 1.0
    %v237 = vmul.f32 %v234, %v152
    %239 = vrot.lane.b32.xlu0 %v236, 64
    %v240 = vpop.permute.xlu0 %239
    %v242 = vmul.f32 %v234, %v240
    %244 = vrot.lane.b32.xlu0 %v242, 32
    %v245 = vpop.permute.xlu0 %244
    %v247 = vadd.f32 %v237, %v245
    %v248 = vmul.f32 %v247, 2.0
    %v249 = vxor.u32 %v248, 2147483648
    %v250 = vmul.f32 %v249, 1.442695
    %v251 = vpow.pop %v250
    %v252 = vadd.f32 %v251, 1.0
    %v253 = vrcp.pop %v252
    %v254 = vmul.f32 %v252, %v253
    %v255 = vsub.f32 1.0, %v254
    %v256 = vmul.f32 %v253, %v255
    %v257 = vadd.f32 %v253, %v256
    %vm258 = vweird.f32 %v252
    %vm259 = vweird.f32 %v253
    %vm260 = vmor %vm258, %vm259
    %v261 = vsel %vm260, %v253, %v257
    %v262 = vand.u32 2147483647, %v252
    %vm263 = vcmp.eq.f32.partialorder %v262, 8.507059e+37
    %v264 = vand.u32 %v252, 2147483648
    %v265 = vor.u32 1.1754944e-38, %v264
    %v266 = vsel %vm263, %v265, %v261
    %v267 = vmul.f32 1.0, %v266
    %v268 = vmul.f32 %v267, 2.0
    %v269 = vsub.f32 %v268, 1.0
    %271 = vrot.lane.b32.xlu0 %v269, 64
    %v272 = vpop.permute.xlu0 %271
    %v274 = vmul.f32 %v234, %v272
    %s275 = sld [smem:[#allocation2 + $0x2]]
    %s276 = scalar_lea.vmem [#allocation7], %s275
    %v277 = vld [vmem:[%s276] sm:$0x1]
    %s278 = sld [smem:[#allocation2 + $0x82]]
    %s279 = scalar_lea.vmem [#allocation7], %s278
    %v280 = vld [vmem:[%s279] sm:$0x1]
    %v282 = vrot.slane %v280, 7
    %v284 = vsel %vm94, %v277, %v282
    %286 = vrot.lane.b32.xlu0 %v274, 32
    %v287 = vpop.permute.xlu0 %286
    %v288 = vsel %vm96, %v287, 0
    %290 = vmatpush.msra.mxu0 0.0
    %291 = vmatpush.msra.mxu0 0.0
    %292 = vmatpush.msra.mxu0 0.0
    %293 = vmatpush.msra.mxu0 0.0
    %294 = vmatpush.msra.mxu0 0.0
    %295 = vmatpush.msra.mxu0 0.0
    %296 = vmatpush.msra.mxu0 0.0
    %297 = vmatpush.msra.mxu0 0.0
    %298 = vmatpush.msra.mxu0 0.0
    %299 = vmatpush.msra.mxu0 0.0
    %300 = vmatpush.msra.mxu0 0.0
    %301 = vmatpush.msra.mxu0 0.0
    %302 = vmatpush.msra.mxu0 %v63
    %303 = vmatpush.msra.mxu0 %v62
    %304 = vmatpush.msra.mxu0 %v61
    %305 = vmatpush.msra.mxu0 %v60
    %306 = vmatmul.f32.gmra.mxu0 %v288
    %v307 = vpop.f32.mrf.mxu0
    %v308 = vadd.f32 0.0, %v307
    %309 = vdwg.mxu0
    %v310 = vadd.f32 %v284, %v308
    %v311 = vxor.u32 %v310, 2147483648
    %v312 = vmul.f32 %v311, 1.442695
    %v313 = vpow.pop %v312
    %v314 = vadd.f32 %v313, 1.0
    %v315 = vrcp.pop %v314
    %v316 = vmul.f32 %v314, %v315
    %v317 = vsub.f32 1.0, %v316
    %v318 = vmul.f32 %v315, %v317
    %v319 = vadd.f32 %v315, %v318
    %vm320 = vweird.f32 %v314
    %vm321 = vweird.f32 %v315
    %vm322 = vmor %vm320, %vm321
    %v323 = vsel %vm322, %v315, %v319
    %v324 = vand.u32 2147483647, %v314
    %vm325 = vcmp.eq.f32.partialorder %v324, 8.507059e+37
    %v326 = vand.u32 %v314, 2147483648
    %v327 = vor.u32 1.1754944e-38, %v326
    %v328 = vsel %vm325, %v327, %v323
    %v329 = vmul.f32 1.0, %v328
    %v330 = vmul.f32 %v329, 2.0
    %v331 = vsub.f32 %v330, 1.0
    %v332 = vmul.f32 %v329, %v247
    %334 = vrot.lane.b32.xlu0 %v331, 64
    %v335 = vpop.permute.xlu0 %334
    %v337 = vmul.f32 %v329, %v335
    %339 = vrot.lane.b32.xlu0 %v337, 32
    %v340 = vpop.permute.xlu0 %339
    %v342 = vadd.f32 %v332, %v340
    %v343 = vmul.f32 %v342, 2.0
    %v344 = vxor.u32 %v343, 2147483648
    %v345 = vmul.f32 %v344, 1.442695
    %v346 = vpow.pop %v345
    %v347 = vadd.f32 %v346, 1.0
    %v348 = vrcp.pop %v347
    %v349 = vmul.f32 %v347, %v348
    %v350 = vsub.f32 1.0, %v349
    %v351 = vmul.f32 %v348, %v350
    %v352 = vadd.f32 %v348, %v351
    %vm353 = vweird.f32 %v347
    %vm354 = vweird.f32 %v348
    %vm355 = vmor %vm353, %vm354
    %v356 = vsel %vm355, %v348, %v352
    %v357 = vand.u32 2147483647, %v347
    %vm358 = vcmp.eq.f32.partialorder %v357, 8.507059e+37
    %v359 = vand.u32 %v347, 2147483648
    %v360 = vor.u32 1.1754944e-38, %v359
    %v361 = vsel %vm358, %v360, %v356
    %v362 = vmul.f32 1.0, %v361
    %v363 = vmul.f32 %v362, 2.0
    %v364 = vsub.f32 %v363, 1.0
    %366 = vrot.lane.b32.xlu0 %v364, 64
    %v367 = vpop.permute.xlu0 %366
    %v369 = vmul.f32 %v329, %v367
    %s370 = sld [smem:[#allocation2 + $0x3]]
    %s371 = scalar_lea.vmem [#allocation7], %s370
    %v372 = vld [vmem:[%s371] sm:$0x1]
    %s373 = sld [smem:[#allocation2 + $0x83]]
    %s374 = scalar_lea.vmem [#allocation7], %s373
    %v375 = vld [vmem:[%s374] sm:$0x1]
    %v377 = vrot.slane %v375, 7
    %v379 = vsel %vm94, %v372, %v377
    %381 = vrot.lane.b32.xlu0 %v369, 32
    %v382 = vpop.permute.xlu0 %381
    %v383 = vsel %vm96, %v382, 0
    %385 = vmatpush.msra.mxu0 0.0
    %386 = vmatpush.msra.mxu0 0.0
    %387 = vmatpush.msra.mxu0 0.0
    %388 = vmatpush.msra.mxu0 0.0
    %389 = vmatpush.msra.mxu0 0.0
    %390 = vmatpush.msra.mxu0 0.0
    %391 = vmatpush.msra.mxu0 0.0
    %392 = vmatpush.msra.mxu0 0.0
    %393 = vmatpush.msra.mxu0 0.0
    %394 = vmatpush.msra.mxu0 0.0
    %395 = vmatpush.msra.mxu0 0.0
    %396 = vmatpush.msra.mxu0 0.0
    %397 = vmatpush.msra.mxu0 %v63
    %398 = vmatpush.msra.mxu0 %v62
    %399 = vmatpush.msra.mxu0 %v61
    %400 = vmatpush.msra.mxu0 %v60
    %401 = vmatmul.f32.gmra.mxu0 %v383
    %v402 = vpop.f32.mrf.mxu0
    %v403 = vadd.f32 0.0, %v402
    %404 = vdwg.mxu0
    %v405 = vadd.f32 %v379, %v403
    %v406 = vxor.u32 %v405, 2147483648
    %v407 = vmul.f32 %v406, 1.442695
    %v408 = vpow.pop %v407
    %v409 = vadd.f32 %v408, 1.0
    %v410 = vrcp.pop %v409
    %v411 = vmul.f32 %v409, %v410
    %v412 = vsub.f32 1.0, %v411
    %v413 = vmul.f32 %v410, %v412
    %v414 = vadd.f32 %v410, %v413
    %vm415 = vweird.f32 %v409
    %vm416 = vweird.f32 %v410
    %vm417 = vmor %vm415, %vm416
    %v418 = vsel %vm417, %v410, %v414
    %v419 = vand.u32 2147483647, %v409
    %vm420 = vcmp.eq.f32.partialorder %v419, 8.507059e+37
    %v421 = vand.u32 %v409, 2147483648
    %v422 = vor.u32 1.1754944e-38, %v421
    %v423 = vsel %vm420, %v422, %v418
    %v424 = vmul.f32 1.0, %v423
    %v425 = vmul.f32 %v424, 2.0
    %v426 = vsub.f32 %v425, 1.0
    %v427 = vmul.f32 %v424, %v342
    %429 = vrot.lane.b32.xlu0 %v426, 64
    %v430 = vpop.permute.xlu0 %429
    %v432 = vmul.f32 %v424, %v430
    %434 = vrot.lane.b32.xlu0 %v432, 32
    %v435 = vpop.permute.xlu0 %434
    %v437 = vadd.f32 %v427, %v435
    %v438 = vmul.f32 %v437, 2.0
    %v439 = vxor.u32 %v438, 2147483648
    %v440 = vmul.f32 %v439, 1.442695
    %v441 = vpow.pop %v440
    %v442 = vadd.f32 %v441, 1.0
    %v443 = vrcp.pop %v442
    %v444 = vmul.f32 %v442, %v443
    %v445 = vsub.f32 1.0, %v444
    %v446 = vmul.f32 %v443, %v445
    %v447 = vadd.f32 %v443, %v446
    %vm448 = vweird.f32 %v442
    %vm449 = vweird.f32 %v443
    %vm450 = vmor %vm448, %vm449
    %v451 = vsel %vm450, %v443, %v447
    %v452 = vand.u32 2147483647, %v442
    %vm453 = vcmp.eq.f32.partialorder %v452, 8.507059e+37
    %v454 = vand.u32 %v442, 2147483648
    %v455 = vor.u32 1.1754944e-38, %v454
    %v456 = vsel %vm453, %v455, %v451
    %v457 = vmul.f32 1.0, %v456
    %v458 = vmul.f32 %v457, 2.0
    %v459 = vsub.f32 %v458, 1.0
    %461 = vrot.lane.b32.xlu0 %v459, 64
    %v462 = vpop.permute.xlu0 %461
    %v464 = vmul.f32 %v424, %v462
    %s465 = sld [smem:[#allocation2 + $0x4]]
    %s466 = scalar_lea.vmem [#allocation7], %s465
    %v467 = vld [vmem:[%s466] sm:$0x1]
    %s468 = sld [smem:[#allocation2 + $0x84]]
    %s469 = scalar_lea.vmem [#allocation7], %s468
    %v470 = vld [vmem:[%s469] sm:$0x1]
    %v472 = vrot.slane %v470, 7
    %v474 = vsel %vm94, %v467, %v472
    %476 = vrot.lane.b32.xlu0 %v464, 32
    %v477 = vpop.permute.xlu0 %476
    %v478 = vsel %vm96, %v477, 0
    %480 = vmatpush.msra.mxu0 0.0
    %481 = vmatpush.msra.mxu0 0.0
    %482 = vmatpush.msra.mxu0 0.0
    %483 = vmatpush.msra.mxu0 0.0
    %484 = vmatpush.msra.mxu0 0.0
    %485 = vmatpush.msra.mxu0 0.0
    %486 = vmatpush.msra.mxu0 0.0
    %487 = vmatpush.msra.mxu0 0.0
    %488 = vmatpush.msra.mxu0 0.0
    %489 = vmatpush.msra.mxu0 0.0
    %490 = vmatpush.msra.mxu0 0.0
    %491 = vmatpush.msra.mxu0 0.0
    %492 = vmatpush.msra.mxu0 %v63
    %493 = vmatpush.msra.mxu0 %v62
    %494 = vmatpush.msra.mxu0 %v61
    %495 = vmatpush.msra.mxu0 %v60
    %496 = vmatmul.f32.gmra.mxu0 %v478
    %v497 = vpop.f32.mrf.mxu0
    %v498 = vadd.f32 0.0, %v497
    %499 = vdwg.mxu0
    %v500 = vadd.f32 %v474, %v498
    %v501 = vxor.u32 %v500, 2147483648
    %v502 = vmul.f32 %v501, 1.442695
    %v503 = vpow.pop %v502
    %v504 = vadd.f32 %v503, 1.0
    %v505 = vrcp.pop %v504
    %v506 = vmul.f32 %v504, %v505
    %v507 = vsub.f32 1.0, %v506
    %v508 = vmul.f32 %v505, %v507
    %v509 = vadd.f32 %v505, %v508
    %vm510 = vweird.f32 %v504
    %vm511 = vweird.f32 %v505
    %vm512 = vmor %vm510, %vm511
    %v513 = vsel %vm512, %v505, %v509
    %v514 = vand.u32 2147483647, %v504
    %vm515 = vcmp.eq.f32.partialorder %v514, 8.507059e+37
    %v516 = vand.u32 %v504, 2147483648
    %v517 = vor.u32 1.1754944e-38, %v516
    %v518 = vsel %vm515, %v517, %v513
    %v519 = vmul.f32 1.0, %v518
    %v520 = vmul.f32 %v519, 2.0
    %v521 = vsub.f32 %v520, 1.0
    %v522 = vmul.f32 %v519, %v437
    %524 = vrot.lane.b32.xlu0 %v521, 64
    %v525 = vpop.permute.xlu0 %524
    %v527 = vmul.f32 %v519, %v525
    %529 = vrot.lane.b32.xlu0 %v527, 32
    %v530 = vpop.permute.xlu0 %529
    %v532 = vadd.f32 %v522, %v530
    %v533 = vmul.f32 %v532, 2.0
    %v534 = vxor.u32 %v533, 2147483648
    %v535 = vmul.f32 %v534, 1.442695
    %v536 = vpow.pop %v535
    %v537 = vadd.f32 %v536, 1.0
    %v538 = vrcp.pop %v537
    %v539 = vmul.f32 %v537, %v538
    %v540 = vsub.f32 1.0, %v539
    %v541 = vmul.f32 %v538, %v540
    %v542 = vadd.f32 %v538, %v541
    %vm543 = vweird.f32 %v537
    %vm544 = vweird.f32 %v538
    %vm545 = vmor %vm543, %vm544
    %v546 = vsel %vm545, %v538, %v542
    %v547 = vand.u32 2147483647, %v537
    %vm548 = vcmp.eq.f32.partialorder %v547, 8.507059e+37
    %v549 = vand.u32 %v537, 2147483648
    %v550 = vor.u32 1.1754944e-38, %v549
    %v551 = vsel %vm548, %v550, %v546
    %v552 = vmul.f32 1.0, %v551
    %v553 = vmul.f32 %v552, 2.0
    %v554 = vsub.f32 %v553, 1.0
    %556 = vrot.lane.b32.xlu0 %v554, 64
    %v557 = vpop.permute.xlu0 %556
    %v559 = vmul.f32 %v519, %v557
    %s560 = sld [smem:[#allocation2 + $0x5]]
    %s561 = scalar_lea.vmem [#allocation7], %s560
    %v562 = vld [vmem:[%s561] sm:$0x1]
    %s563 = sld [smem:[#allocation2 + $0x85]]
    %s564 = scalar_lea.vmem [#allocation7], %s563
    %v565 = vld [vmem:[%s564] sm:$0x1]
    %v567 = vrot.slane %v565, 7
    %v569 = vsel %vm94, %v562, %v567
    %571 = vrot.lane.b32.xlu0 %v559, 32
    %v572 = vpop.permute.xlu0 %571
    %v573 = vsel %vm96, %v572, 0
    %575 = vmatpush.msra.mxu0 0.0
    %576 = vmatpush.msra.mxu0 0.0
    %577 = vmatpush.msra.mxu0 0.0
    %578 = vmatpush.msra.mxu0 0.0
    %579 = vmatpush.msra.mxu0 0.0
    %580 = vmatpush.msra.mxu0 0.0
    %581 = vmatpush.msra.mxu0 0.0
    %582 = vmatpush.msra.mxu0 0.0
    %583 = vmatpush.msra.mxu0 0.0
    %584 = vmatpush.msra.mxu0 0.0
    %585 = vmatpush.msra.mxu0 0.0
    %586 = vmatpush.msra.mxu0 0.0
    %587 = vmatpush.msra.mxu0 %v63
    %588 = vmatpush.msra.mxu0 %v62
    %589 = vmatpush.msra.mxu0 %v61
    %590 = vmatpush.msra.mxu0 %v60
    %591 = vmatmul.f32.gmra.mxu0 %v573
    %v592 = vpop.f32.mrf.mxu0
    %v593 = vadd.f32 0.0, %v592
    %594 = vdwg.mxu0
    %v595 = vadd.f32 %v569, %v593
    %v596 = vxor.u32 %v595, 2147483648
    %v597 = vmul.f32 %v596, 1.442695
    %v598 = vpow.pop %v597
    %v599 = vadd.f32 %v598, 1.0
    %v600 = vrcp.pop %v599
    %v601 = vmul.f32 %v599, %v600
    %v602 = vsub.f32 1.0, %v601
    %v603 = vmul.f32 %v600, %v602
    %v604 = vadd.f32 %v600, %v603
    %vm605 = vweird.f32 %v599
    %vm606 = vweird.f32 %v600
    %vm607 = vmor %vm605, %vm606
    %v608 = vsel %vm607, %v600, %v604
    %v609 = vand.u32 2147483647, %v599
    %vm610 = vcmp.eq.f32.partialorder %v609, 8.507059e+37
    %v611 = vand.u32 %v599, 2147483648
    %v612 = vor.u32 1.1754944e-38, %v611
    %v613 = vsel %vm610, %v612, %v608
    %v614 = vmul.f32 1.0, %v613
    %v615 = vmul.f32 %v614, 2.0
    %v616 = vsub.f32 %v615, 1.0
    %v617 = vmul.f32 %v614, %v532
    %619 = vrot.lane.b32.xlu0 %v616, 64
    %v620 = vpop.permute.xlu0 %619
    %v622 = vmul.f32 %v614, %v620
    %624 = vrot.lane.b32.xlu0 %v622, 32
    %v625 = vpop.permute.xlu0 %624
    %v627 = vadd.f32 %v617, %v625
    %v628 = vmul.f32 %v627, 2.0
    %v629 = vxor.u32 %v628, 2147483648
    %v630 = vmul.f32 %v629, 1.442695
    %v631 = vpow.pop %v630
    %v632 = vadd.f32 %v631, 1.0
    %v633 = vrcp.pop %v632
    %v634 = vmul.f32 %v632, %v633
    %v635 = vsub.f32 1.0, %v634
    %v636 = vmul.f32 %v633, %v635
    %v637 = vadd.f32 %v633, %v636
    %vm638 = vweird.f32 %v632
    %vm639 = vweird.f32 %v633
    %vm640 = vmor %vm638, %vm639
    %v641 = vsel %vm640, %v633, %v637
    %v642 = vand.u32 2147483647, %v632
    %vm643 = vcmp.eq.f32.partialorder %v642, 8.507059e+37
    %v644 = vand.u32 %v632, 2147483648
    %v645 = vor.u32 1.1754944e-38, %v644
    %v646 = vsel %vm643, %v645, %v641
    %v647 = vmul.f32 1.0, %v646
    %v648 = vmul.f32 %v647, 2.0
    %v649 = vsub.f32 %v648, 1.0
    %651 = vrot.lane.b32.xlu0 %v649, 64
    %v652 = vpop.permute.xlu0 %651
    %v654 = vmul.f32 %v614, %v652
    %s655 = sld [smem:[#allocation2 + $0x6]]
    %s656 = scalar_lea.vmem [#allocation7], %s655
    %v657 = vld [vmem:[%s656] sm:$0x1]
    %s658 = sld [smem:[#allocation2 + $0x86]]
    %s659 = scalar_lea.vmem [#allocation7], %s658
    %v660 = vld [vmem:[%s659] sm:$0x1]
    %v662 = vrot.slane %v660, 7
    %v664 = vsel %vm94, %v657, %v662
    %666 = vrot.lane.b32.xlu0 %v654, 32
    %v667 = vpop.permute.xlu0 %666
    %v668 = vsel %vm96, %v667, 0
    %670 = vmatpush.msra.mxu0 0.0
    %671 = vmatpush.msra.mxu0 0.0
    %672 = vmatpush.msra.mxu0 0.0
    %673 = vmatpush.msra.mxu0 0.0
    %674 = vmatpush.msra.mxu0 0.0
    %675 = vmatpush.msra.mxu0 0.0
    %676 = vmatpush.msra.mxu0 0.0
    %677 = vmatpush.msra.mxu0 0.0
    %678 = vmatpush.msra.mxu0 0.0
    %679 = vmatpush.msra.mxu0 0.0
    %680 = vmatpush.msra.mxu0 0.0
    %681 = vmatpush.msra.mxu0 0.0
    %682 = vmatpush.msra.mxu0 %v63
    %683 = vmatpush.msra.mxu0 %v62
    %684 = vmatpush.msra.mxu0 %v61
    %685 = vmatpush.msra.mxu0 %v60
    %686 = vmatmul.f32.gmra.mxu0 %v668
    %v687 = vpop.f32.mrf.mxu0
    %v688 = vadd.f32 0.0, %v687
    %689 = vdwg.mxu0
    %v690 = vadd.f32 %v664, %v688
    %v691 = vxor.u32 %v690, 2147483648
    %v692 = vmul.f32 %v691, 1.442695
    %v693 = vpow.pop %v692
    %v694 = vadd.f32 %v693, 1.0
    %v695 = vrcp.pop %v694
    %v696 = vmul.f32 %v694, %v695
    %v697 = vsub.f32 1.0, %v696
    %v698 = vmul.f32 %v695, %v697
    %v699 = vadd.f32 %v695, %v698
    %vm700 = vweird.f32 %v694
    %vm701 = vweird.f32 %v695
    %vm702 = vmor %vm700, %vm701
    %v703 = vsel %vm702, %v695, %v699
    %v704 = vand.u32 2147483647, %v694
    %vm705 = vcmp.eq.f32.partialorder %v704, 8.507059e+37
    %v706 = vand.u32 %v694, 2147483648
    %v707 = vor.u32 1.1754944e-38, %v706
    %v708 = vsel %vm705, %v707, %v703
    %v709 = vmul.f32 1.0, %v708
    %v710 = vmul.f32 %v709, 2.0
    %v711 = vsub.f32 %v710, 1.0
    %v712 = vmul.f32 %v709, %v627
    %714 = vrot.lane.b32.xlu0 %v711, 64
    %v715 = vpop.permute.xlu0 %714
    %v717 = vmul.f32 %v709, %v715
    %719 = vrot.lane.b32.xlu0 %v717, 32
    %v720 = vpop.permute.xlu0 %719
    %v722 = vadd.f32 %v712, %v720
    %v723 = vmul.f32 %v722, 2.0
    %v724 = vxor.u32 %v723, 2147483648
    %v725 = vmul.f32 %v724, 1.442695
    %v726 = vpow.pop %v725
    %v727 = vadd.f32 %v726, 1.0
    %v728 = vrcp.pop %v727
    %v729 = vmul.f32 %v727, %v728
    %v730 = vsub.f32 1.0, %v729
    %v731 = vmul.f32 %v728, %v730
    %v732 = vadd.f32 %v728, %v731
    %vm733 = vweird.f32 %v727
    %vm734 = vweird.f32 %v728
    %vm735 = vmor %vm733, %vm734
    %v736 = vsel %vm735, %v728, %v732
    %v737 = vand.u32 2147483647, %v727
    %vm738 = vcmp.eq.f32.partialorder %v737, 8.507059e+37
    %v739 = vand.u32 %v727, 2147483648
    %v740 = vor.u32 1.1754944e-38, %v739
    %v741 = vsel %vm738, %v740, %v736
    %v742 = vmul.f32 1.0, %v741
    %v743 = vmul.f32 %v742, 2.0
    %v744 = vsub.f32 %v743, 1.0
    %746 = vrot.lane.b32.xlu0 %v744, 64
    %v747 = vpop.permute.xlu0 %746
    %v749 = vmul.f32 %v709, %v747
    %s750 = sld [smem:[#allocation2 + $0x7]]
    %s751 = scalar_lea.vmem [#allocation7], %s750
    %v752 = vld [vmem:[%s751] sm:$0x1]
    %s753 = sld [smem:[#allocation2 + $0x87]]
    %s754 = scalar_lea.vmem [#allocation7], %s753
    %v755 = vld [vmem:[%s754] sm:$0x1]
    %v757 = vrot.slane %v755, 7
    %v759 = vsel %vm94, %v752, %v757
    %761 = vrot.lane.b32.xlu0 %v749, 32
    %v762 = vpop.permute.xlu0 %761
    %v763 = vsel %vm96, %v762, 0
    %765 = vmatpush.msra.mxu0 0.0
    %766 = vmatpush.msra.mxu0 0.0
    %767 = vmatpush.msra.mxu0 0.0
    %768 = vmatpush.msra.mxu0 0.0
    %769 = vmatpush.msra.mxu0 0.0
    %770 = vmatpush.msra.mxu0 0.0
    %771 = vmatpush.msra.mxu0 0.0
    %772 = vmatpush.msra.mxu0 0.0
    %773 = vmatpush.msra.mxu0 0.0
    %774 = vmatpush.msra.mxu0 0.0
    %775 = vmatpush.msra.mxu0 0.0
    %776 = vmatpush.msra.mxu0 0.0
    %777 = vmatpush.msra.mxu0 %v63
    %778 = vmatpush.msra.mxu0 %v62
    %779 = vmatpush.msra.mxu0 %v61
    %780 = vmatpush.msra.mxu0 %v60
    %781 = vmatmul.f32.gmra.mxu0 %v763
    %v782 = vpop.f32.mrf.mxu0
    %v783 = vadd.f32 0.0, %v782
    %784 = vdwg.mxu0
    %v785 = vadd.f32 %v759, %v783
    %v786 = vxor.u32 %v785, 2147483648
    %v787 = vmul.f32 %v786, 1.442695
    %v788 = vpow.pop %v787
    %v789 = vadd.f32 %v788, 1.0
    %v790 = vrcp.pop %v789
    %v791 = vmul.f32 %v789, %v790
    %v792 = vsub.f32 1.0, %v791
    %v793 = vmul.f32 %v790, %v792
    %v794 = vadd.f32 %v790, %v793
    %vm795 = vweird.f32 %v789
    %vm796 = vweird.f32 %v790
    %vm797 = vmor %vm795, %vm796
    %v798 = vsel %vm797, %v790, %v794
    %v799 = vand.u32 2147483647, %v789
    %vm800 = vcmp.eq.f32.partialorder %v799, 8.507059e+37
    %v801 = vand.u32 %v789, 2147483648
    %v802 = vor.u32 1.1754944e-38, %v801
    %v803 = vsel %vm800, %v802, %v798
    %v804 = vmul.f32 1.0, %v803
    %v805 = vmul.f32 %v804, 2.0
    %v806 = vsub.f32 %v805, 1.0
    %v807 = vmul.f32 %v804, %v722
    %809 = vrot.lane.b32.xlu0 %v806, 64
    %v810 = vpop.permute.xlu0 %809
    %v812 = vmul.f32 %v804, %v810
    %814 = vrot.lane.b32.xlu0 %v812, 32
    %v815 = vpop.permute.xlu0 %814
    %v817 = vadd.f32 %v807, %v815
    %v818 = vmul.f32 %v817, 2.0
    %v819 = vxor.u32 %v818, 2147483648
    %v820 = vmul.f32 %v819, 1.442695
    %v821 = vpow.pop %v820
    %v822 = vadd.f32 %v821, 1.0
    %v823 = vrcp.pop %v822
    %v824 = vmul.f32 %v822, %v823
    %v825 = vsub.f32 1.0, %v824
    %v826 = vmul.f32 %v823, %v825
    %v827 = vadd.f32 %v823, %v826
    %vm828 = vweird.f32 %v822
    %vm829 = vweird.f32 %v823
    %vm830 = vmor %vm828, %vm829
    %v831 = vsel %vm830, %v823, %v827
    %v832 = vand.u32 2147483647, %v822
    %vm833 = vcmp.eq.f32.partialorder %v832, 8.507059e+37
    %v834 = vand.u32 %v822, 2147483648
    %v835 = vor.u32 1.1754944e-38, %v834
    %v836 = vsel %vm833, %v835, %v831
    %v837 = vmul.f32 1.0, %v836
    %v838 = vmul.f32 %v837, 2.0
    %v839 = vsub.f32 %v838, 1.0
    %841 = vrot.lane.b32.xlu0 %v839, 64
    %v842 = vpop.permute.xlu0 %841
    %v844 = vmul.f32 %v804, %v842
    %v845 = vperm.slane %v68, 0
    %847 = vrot.lane.b32.xlu0 %v844, 32
    %v848 = vpop.permute.xlu0 %847
    %v849 = vsel %vm96, %v848, 0
    %851 = vmatpush.msra.mxu0 0.0
    %852 = vmatpush.msra.mxu0 0.0
    %853 = vmatpush.msra.mxu0 0.0
    %854 = vmatpush.msra.mxu0 0.0
    %855 = vmatpush.msra.mxu0 0.0
    %856 = vmatpush.msra.mxu0 0.0
    %857 = vmatpush.msra.mxu0 0.0
    %858 = vmatpush.msra.mxu0 0.0
    %859 = vmatpush.msra.mxu0 0.0
    %860 = vmatpush.msra.mxu0 0.0
    %861 = vmatpush.msra.mxu0 0.0
    %862 = vmatpush.msra.mxu0 0.0
    %863 = vmatpush.msra.mxu0 %v67
    %864 = vmatpush.msra.mxu0 %v66
    %865 = vmatpush.msra.mxu0 %v65
    %866 = vmatpush.msra.mxu0 %v64
    %867 = vmatmul.f32.gmra.mxu0 %v849
    %v868 = vpop.f32.mrf.mxu0
    %v869 = vadd.f32 %v845, %v868
    %870 = vdwg.mxu0
    %v871 = vmul.f32 %v869, 0.5
    %v872 = vmul.f32 %v871, 1.442695
    %v873 = vpow.pop %v872
    %875 = vrot.lane.b32.xlu0 %v873, 112
    %v876 = vpop.permute.xlu0 %875
    %v878 = vmul.f32 %v84, %v876
    %v879 = vadd.f32 %v869, %v878
    %v880 = vperm.slane %v75, 0
    %vm881 = vcmask 130048
    %v883 = vsel %vm881, %v879, 0
    %885 = vmatpush.msra.mxu0 0.0
    %886 = vmatpush.msra.mxu0 0.0
    %887 = vmatpush.msra.mxu0 0.0
    %888 = vmatpush.msra.mxu0 0.0
    %889 = vmatpush.msra.mxu0 0.0
    %890 = vmatpush.msra.mxu0 0.0
    %891 = vmatpush.msra.mxu0 0.0
    %892 = vmatpush.msra.mxu0 0.0
    %893 = vmatpush.msra.mxu0 0.0
    %894 = vmatpush.msra.mxu0 0.0
    %895 = vmatpush.msra.mxu0 0.0
    %896 = vmatpush.msra.mxu0 0.0
    %897 = vmatpush.msra.mxu0 0.0
    %898 = vmatpush.msra.mxu0 0.0
    %899 = vmatpush.msra.mxu0 %v70
    %900 = vmatpush.msra.mxu0 %v69
    %901 = vmatmul.f32.gmra.mxu0 %v883
    %v902 = vpop.f32.mrf.mxu0
    %v903 = vadd.f32 %v880, %v902
    %904 = vdwg.mxu0
    %905 = vmatpush.msra.mxu0 0.0
    %906 = vmatpush.msra.mxu0 0.0
    %907 = vmatpush.msra.mxu0 0.0
    %908 = vmatpush.msra.mxu0 0.0
    %909 = vmatpush.msra.mxu0 0.0
    %910 = vmatpush.msra.mxu0 0.0
    %911 = vmatpush.msra.mxu0 0.0
    %912 = vmatpush.msra.mxu0 0.0
    %913 = vmatpush.msra.mxu0 0.0
    %914 = vmatpush.msra.mxu0 0.0
    %915 = vmatpush.msra.mxu0 0.0
    %916 = vmatpush.msra.mxu0 0.0
    %917 = vmatpush.msra.mxu0 %v74
    %918 = vmatpush.msra.mxu0 %v73
    %919 = vmatpush.msra.mxu0 %v72
    %920 = vmatpush.msra.mxu0 %v71
    %921 = vmatmul.f32.gmra.mxu0 %v98
    %v922 = vpop.f32.mrf.mxu0
    %v923 = vadd.f32 0.0, %v922
    %924 = vdwg.mxu0
    %v925 = vadd.f32 %v903, %v923
    %v926 = vxor.u32 %v925, 2147483648
    %v927 = vmul.f32 %v926, 1.442695
    %v928 = vpow.pop %v927
    %v929 = vadd.f32 %v928, 1.0
    %v930 = vrcp.pop %v929
    %v931 = vmul.f32 %v929, %v930
    %v932 = vsub.f32 1.0, %v931
    %v933 = vmul.f32 %v930, %v932
    %v934 = vadd.f32 %v930, %v933
    %vm935 = vweird.f32 %v929
    %vm936 = vweird.f32 %v930
    %vm937 = vmor %vm935, %vm936
    %v938 = vsel %vm937, %v930, %v934
    %v939 = vand.u32 2147483647, %v929
    %vm940 = vcmp.eq.f32.partialorder %v939, 8.507059e+37
    %v941 = vand.u32 %v929, 2147483648
    %v942 = vor.u32 1.1754944e-38, %v941
    %v943 = vsel %vm940, %v942, %v938
    %v944 = vmul.f32 1.0, %v943
    %v945 = vmul.f32 %v944, 2.0
    %v946 = vsub.f32 %v945, 1.0
    %v947 = vmul.f32 %v944, 0.0
    %949 = vrot.lane.b32.xlu0 %v946, 64
    %v950 = vpop.permute.xlu0 %949
    %v952 = vmul.f32 %v944, %v950
    %954 = vrot.lane.b32.xlu0 %v952, 32
    %v955 = vpop.permute.xlu0 %954
    %v957 = vadd.f32 %v947, %v955
    %v958 = vmul.f32 %v957, 2.0
    %v959 = vxor.u32 %v958, 2147483648
    %v960 = vmul.f32 %v959, 1.442695
    %v961 = vpow.pop %v960
    %v962 = vadd.f32 %v961, 1.0
    %v963 = vrcp.pop %v962
    %v964 = vmul.f32 %v962, %v963
    %v965 = vsub.f32 1.0, %v964
    %v966 = vmul.f32 %v963, %v965
    %v967 = vadd.f32 %v963, %v966
    %vm968 = vweird.f32 %v962
    %vm969 = vweird.f32 %v963
    %vm970 = vmor %vm968, %vm969
    %v971 = vsel %vm970, %v963, %v967
    %v972 = vand.u32 2147483647, %v962
    %vm973 = vcmp.eq.f32.partialorder %v972, 8.507059e+37
    %v974 = vand.u32 %v962, 2147483648
    %v975 = vor.u32 1.1754944e-38, %v974
    %v976 = vsel %vm973, %v975, %v971
    %v977 = vmul.f32 1.0, %v976
    %v978 = vmul.f32 %v977, 2.0
    %v979 = vsub.f32 %v978, 1.0
    %981 = vrot.lane.b32.xlu0 %v979, 64
    %v982 = vpop.permute.xlu0 %981
    %v984 = vmul.f32 %v944, %v982
    %986 = vrot.lane.b32.xlu0 %v984, 32
    %v987 = vpop.permute.xlu0 %986
    %v988 = vsel %vm96, %v987, 0
    %990 = vmatpush.msra.mxu0 0.0
    %991 = vmatpush.msra.mxu0 0.0
    %992 = vmatpush.msra.mxu0 0.0
    %993 = vmatpush.msra.mxu0 0.0
    %994 = vmatpush.msra.mxu0 0.0
    %995 = vmatpush.msra.mxu0 0.0
    %996 = vmatpush.msra.mxu0 0.0
    %997 = vmatpush.msra.mxu0 0.0
    %998 = vmatpush.msra.mxu0 0.0
    %999 = vmatpush.msra.mxu0 0.0
    %1000 = vmatpush.msra.mxu0 0.0
    %1001 = vmatpush.msra.mxu0 0.0
    %1002 = vmatpush.msra.mxu0 %v74
    %1003 = vmatpush.msra.mxu0 %v73
    %1004 = vmatpush.msra.mxu0 %v72
    %1005 = vmatpush.msra.mxu0 %v71
    %1006 = vmatmul.f32.gmra.mxu0 %v988
    %v1007 = vpop.f32.mrf.mxu0
    %v1008 = vadd.f32 0.0, %v1007
    %1009 = vdwg.mxu0
    %v1010 = vadd.f32 %v903, %v1008
    %v1011 = vxor.u32 %v1010, 2147483648
    %v1012 = vmul.f32 %v1011, 1.442695
    %v1013 = vpow.pop %v1012
    %v1014 = vadd.f32 %v1013, 1.0
    %v1015 = vrcp.pop %v1014
    %v1016 = vmul.f32 %v1014, %v1015
    %v1017 = vsub.f32 1.0, %v1016
    %v1018 = vmul.f32 %v1015, %v1017
    %v1019 = vadd.f32 %v1015, %v1018
    %vm1020 = vweird.f32 %v1014
    %vm1021 = vweird.f32 %v1015
    %vm1022 = vmor %vm1020, %vm1021
    %v1023 = vsel %vm1022, %v1015, %v1019
    %v1024 = vand.u32 2147483647, %v1014
    %vm1025 = vcmp.eq.f32.partialorder %v1024, 8.507059e+37
    %v1026 = vand.u32 %v1014, 2147483648
    %v1027 = vor.u32 1.1754944e-38, %v1026
    %v1028 = vsel %vm1025, %v1027, %v1023
    %v1029 = vmul.f32 1.0, %v1028
    %v1030 = vmul.f32 %v1029, 2.0
    %v1031 = vsub.f32 %v1030, 1.0
    %v1032 = vmul.f32 %v1029, %v957
    %1034 = vrot.lane.b32.xlu0 %v1031, 64
    %v1035 = vpop.permute.xlu0 %1034
    %v1037 = vmul.f32 %v1029, %v1035
    %1039 = vrot.lane.b32.xlu0 %v1037, 32
    %v1040 = vpop.permute.xlu0 %1039
    %v1042 = vadd.f32 %v1032, %v1040
    %v1043 = vmul.f32 %v1042, 2.0
    %v1044 = vxor.u32 %v1043, 2147483648
    %v1045 = vmul.f32 %v1044, 1.442695
    %v1046 = vpow.pop %v1045
    %v1047 = vadd.f32 %v1046, 1.0
    %v1048 = vrcp.pop %v1047
    %v1049 = vmul.f32 %v1047, %v1048
    %v1050 = vsub.f32 1.0, %v1049
    %v1051 = vmul.f32 %v1048, %v1050
    %v1052 = vadd.f32 %v1048, %v1051
    %vm1053 = vweird.f32 %v1047
    %vm1054 = vweird.f32 %v1048
    %vm1055 = vmor %vm1053, %vm1054
    %v1056 = vsel %vm1055, %v1048, %v1052
    %v1057 = vand.u32 2147483647, %v1047
    %vm1058 = vcmp.eq.f32.partialorder %v1057, 8.507059e+37
    %v1059 = vand.u32 %v1047, 2147483648
    %v1060 = vor.u32 1.1754944e-38, %v1059
    %v1061 = vsel %vm1058, %v1060, %v1056
    %v1062 = vmul.f32 1.0, %v1061
    %v1063 = vmul.f32 %v1062, 2.0
    %v1064 = vsub.f32 %v1063, 1.0
    %1066 = vrot.lane.b32.xlu0 %v1064, 64
    %v1067 = vpop.permute.xlu0 %1066
    %v1069 = vmul.f32 %v1029, %v1067
    %1071 = vrot.lane.b32.xlu0 %v1069, 32
    %v1072 = vpop.permute.xlu0 %1071
    %v1073 = vsel %vm96, %v1072, 0
    %1075 = vmatpush.msra.mxu0 0.0
    %1076 = vmatpush.msra.mxu0 0.0
    %1077 = vmatpush.msra.mxu0 0.0
    %1078 = vmatpush.msra.mxu0 0.0
    %1079 = vmatpush.msra.mxu0 0.0
    %1080 = vmatpush.msra.mxu0 0.0
    %1081 = vmatpush.msra.mxu0 0.0
    %1082 = vmatpush.msra.mxu0 0.0
    %1083 = vmatpush.msra.mxu0 0.0
    %1084 = vmatpush.msra.mxu0 0.0
    %1085 = vmatpush.msra.mxu0 0.0
    %1086 = vmatpush.msra.mxu0 0.0
    %1087 = vmatpush.msra.mxu0 %v74
    %1088 = vmatpush.msra.mxu0 %v73
    %1089 = vmatpush.msra.mxu0 %v72
    %1090 = vmatpush.msra.mxu0 %v71
    %1091 = vmatmul.f32.gmra.mxu0 %v1073
    %v1092 = vpop.f32.mrf.mxu0
    %v1093 = vadd.f32 0.0, %v1092
    %1094 = vdwg.mxu0
    %v1095 = vadd.f32 %v903, %v1093
    %v1096 = vxor.u32 %v1095, 2147483648
    %v1097 = vmul.f32 %v1096, 1.442695
    %v1098 = vpow.pop %v1097
    %v1099 = vadd.f32 %v1098, 1.0
    %v1100 = vrcp.pop %v1099
    %v1101 = vmul.f32 %v1099, %v1100
    %v1102 = vsub.f32 1.0, %v1101
    %v1103 = vmul.f32 %v1100, %v1102
    %v1104 = vadd.f32 %v1100, %v1103
    %vm1105 = vweird.f32 %v1099
    %vm1106 = vweird.f32 %v1100
    %vm1107 = vmor %vm1105, %vm1106
    %v1108 = vsel %vm1107, %v1100, %v1104
    %v1109 = vand.u32 2147483647, %v1099
    %vm1110 = vcmp.eq.f32.partialorder %v1109, 8.507059e+37
    %v1111 = vand.u32 %v1099, 2147483648
    %v1112 = vor.u32 1.1754944e-38, %v1111
    %v1113 = vsel %vm1110, %v1112, %v1108
    %v1114 = vmul.f32 1.0, %v1113
    %v1115 = vmul.f32 %v1114, 2.0
    %v1116 = vsub.f32 %v1115, 1.0
    %v1117 = vmul.f32 %v1114, %v1042
    %1119 = vrot.lane.b32.xlu0 %v1116, 64
    %v1120 = vpop.permute.xlu0 %1119
    %v1122 = vmul.f32 %v1114, %v1120
    %1124 = vrot.lane.b32.xlu0 %v1122, 32
    %v1125 = vpop.permute.xlu0 %1124
    %v1127 = vadd.f32 %v1117, %v1125
    %v1128 = vmul.f32 %v1127, 2.0
    %v1129 = vxor.u32 %v1128, 2147483648
    %v1130 = vmul.f32 %v1129, 1.442695
    %v1131 = vpow.pop %v1130
    %v1132 = vadd.f32 %v1131, 1.0
    %v1133 = vrcp.pop %v1132
    %v1134 = vmul.f32 %v1132, %v1133
    %v1135 = vsub.f32 1.0, %v1134
    %v1136 = vmul.f32 %v1133, %v1135
    %v1137 = vadd.f32 %v1133, %v1136
    %vm1138 = vweird.f32 %v1132
    %vm1139 = vweird.f32 %v1133
    %vm1140 = vmor %vm1138, %vm1139
    %v1141 = vsel %vm1140, %v1133, %v1137
    %v1142 = vand.u32 2147483647, %v1132
    %vm1143 = vcmp.eq.f32.partialorder %v1142, 8.507059e+37
    %v1144 = vand.u32 %v1132, 2147483648
    %v1145 = vor.u32 1.1754944e-38, %v1144
    %v1146 = vsel %vm1143, %v1145, %v1141
    %v1147 = vmul.f32 1.0, %v1146
    %v1148 = vmul.f32 %v1147, 2.0
    %v1149 = vsub.f32 %v1148, 1.0
    %1151 = vrot.lane.b32.xlu0 %v1149, 64
    %v1152 = vpop.permute.xlu0 %1151
    %v1154 = vmul.f32 %v1114, %v1152
    %1156 = vrot.lane.b32.xlu0 %v1154, 32
    %v1157 = vpop.permute.xlu0 %1156
    %v1158 = vsel %vm96, %v1157, 0
    %1160 = vmatpush.msra.mxu0 0.0
    %1161 = vmatpush.msra.mxu0 0.0
    %1162 = vmatpush.msra.mxu0 0.0
    %1163 = vmatpush.msra.mxu0 0.0
    %1164 = vmatpush.msra.mxu0 0.0
    %1165 = vmatpush.msra.mxu0 0.0
    %1166 = vmatpush.msra.mxu0 0.0
    %1167 = vmatpush.msra.mxu0 0.0
    %1168 = vmatpush.msra.mxu0 0.0
    %1169 = vmatpush.msra.mxu0 0.0
    %1170 = vmatpush.msra.mxu0 0.0
    %1171 = vmatpush.msra.mxu0 0.0
    %1172 = vmatpush.msra.mxu0 %v74
    %1173 = vmatpush.msra.mxu0 %v73
    %1174 = vmatpush.msra.mxu0 %v72
    %1175 = vmatpush.msra.mxu0 %v71
    %1176 = vmatmul.f32.gmra.mxu0 %v1158
    %v1177 = vpop.f32.mrf.mxu0
    %v1178 = vadd.f32 0.0, %v1177
    %1179 = vdwg.mxu0
    %v1180 = vadd.f32 %v903, %v1178
    %v1181 = vxor.u32 %v1180, 2147483648
    %v1182 = vmul.f32 %v1181, 1.442695
    %v1183 = vpow.pop %v1182
    %v1184 = vadd.f32 %v1183, 1.0
    %v1185 = vrcp.pop %v1184
    %v1186 = vmul.f32 %v1184, %v1185
    %v1187 = vsub.f32 1.0, %v1186
    %v1188 = vmul.f32 %v1185, %v1187
    %v1189 = vadd.f32 %v1185, %v1188
    %vm1190 = vweird.f32 %v1184
    %vm1191 = vweird.f32 %v1185
    %vm1192 = vmor %vm1190, %vm1191
    %v1193 = vsel %vm1192, %v1185, %v1189
    %v1194 = vand.u32 2147483647, %v1184
    %vm1195 = vcmp.eq.f32.partialorder %v1194, 8.507059e+37
    %v1196 = vand.u32 %v1184, 2147483648
    %v1197 = vor.u32 1.1754944e-38, %v1196
    %v1198 = vsel %vm1195, %v1197, %v1193
    %v1199 = vmul.f32 1.0, %v1198
    %v1200 = vmul.f32 %v1199, 2.0
    %v1201 = vsub.f32 %v1200, 1.0
    %v1202 = vmul.f32 %v1199, %v1127
    %1204 = vrot.lane.b32.xlu0 %v1201, 64
    %v1205 = vpop.permute.xlu0 %1204
    %v1207 = vmul.f32 %v1199, %v1205
    %1209 = vrot.lane.b32.xlu0 %v1207, 32
    %v1210 = vpop.permute.xlu0 %1209
    %v1212 = vadd.f32 %v1202, %v1210
    %v1213 = vmul.f32 %v1212, 2.0
    %v1214 = vxor.u32 %v1213, 2147483648
    %v1215 = vmul.f32 %v1214, 1.442695
    %v1216 = vpow.pop %v1215
    %v1217 = vadd.f32 %v1216, 1.0
    %v1218 = vrcp.pop %v1217
    %v1219 = vmul.f32 %v1217, %v1218
    %v1220 = vsub.f32 1.0, %v1219
    %v1221 = vmul.f32 %v1218, %v1220
    %v1222 = vadd.f32 %v1218, %v1221
    %vm1223 = vweird.f32 %v1217
    %vm1224 = vweird.f32 %v1218
    %vm1225 = vmor %vm1223, %vm1224
    %v1226 = vsel %vm1225, %v1218, %v1222
    %v1227 = vand.u32 2147483647, %v1217
    %vm1228 = vcmp.eq.f32.partialorder %v1227, 8.507059e+37
    %v1229 = vand.u32 %v1217, 2147483648
    %v1230 = vor.u32 1.1754944e-38, %v1229
    %v1231 = vsel %vm1228, %v1230, %v1226
    %v1232 = vmul.f32 1.0, %v1231
    %v1233 = vmul.f32 %v1232, 2.0
    %v1234 = vsub.f32 %v1233, 1.0
    %1236 = vrot.lane.b32.xlu0 %v1234, 64
    %v1237 = vpop.permute.xlu0 %1236
    %v1239 = vmul.f32 %v1199, %v1237
    %1241 = vrot.lane.b32.xlu0 %v1239, 32
    %v1242 = vpop.permute.xlu0 %1241
    %v1243 = vsel %vm96, %v1242, 0
    %1245 = vmatpush.msra.mxu0 0.0
    %1246 = vmatpush.msra.mxu0 0.0
    %1247 = vmatpush.msra.mxu0 0.0
    %1248 = vmatpush.msra.mxu0 0.0
    %1249 = vmatpush.msra.mxu0 0.0
    %1250 = vmatpush.msra.mxu0 0.0
    %1251 = vmatpush.msra.mxu0 0.0
    %1252 = vmatpush.msra.mxu0 0.0
    %1253 = vmatpush.msra.mxu0 0.0
    %1254 = vmatpush.msra.mxu0 0.0
    %1255 = vmatpush.msra.mxu0 0.0
    %1256 = vmatpush.msra.mxu0 0.0
    %1257 = vmatpush.msra.mxu0 %v74
    %1258 = vmatpush.msra.mxu0 %v73
    %1259 = vmatpush.msra.mxu0 %v72
    %1260 = vmatpush.msra.mxu0 %v71
    %1261 = vmatmul.f32.gmra.mxu0 %v1243
    %v1262 = vpop.f32.mrf.mxu0
    %v1263 = vadd.f32 0.0, %v1262
    %1264 = vdwg.mxu0
    %v1265 = vadd.f32 %v903, %v1263
    %v1266 = vxor.u32 %v1265, 2147483648
    %v1267 = vmul.f32 %v1266, 1.442695
    %v1268 = vpow.pop %v1267
    %v1269 = vadd.f32 %v1268, 1.0
    %v1270 = vrcp.pop %v1269
    %v1271 = vmul.f32 %v1269, %v1270
    %v1272 = vsub.f32 1.0, %v1271
    %v1273 = vmul.f32 %v1270, %v1272
    %v1274 = vadd.f32 %v1270, %v1273
    %vm1275 = vweird.f32 %v1269
    %vm1276 = vweird.f32 %v1270
    %vm1277 = vmor %vm1275, %vm1276
    %v1278 = vsel %vm1277, %v1270, %v1274
    %v1279 = vand.u32 2147483647, %v1269
    %vm1280 = vcmp.eq.f32.partialorder %v1279, 8.507059e+37
    %v1281 = vand.u32 %v1269, 2147483648
    %v1282 = vor.u32 1.1754944e-38, %v1281
    %v1283 = vsel %vm1280, %v1282, %v1278
    %v1284 = vmul.f32 1.0, %v1283
    %v1285 = vmul.f32 %v1284, 2.0
    %v1286 = vsub.f32 %v1285, 1.0
    %v1287 = vmul.f32 %v1284, %v1212
    %1289 = vrot.lane.b32.xlu0 %v1286, 64
    %v1290 = vpop.permute.xlu0 %1289
    %v1292 = vmul.f32 %v1284, %v1290
    %1294 = vrot.lane.b32.xlu0 %v1292, 32
    %v1295 = vpop.permute.xlu0 %1294
    %v1297 = vadd.f32 %v1287, %v1295
    %v1298 = vmul.f32 %v1297, 2.0
    %v1299 = vxor.u32 %v1298, 2147483648
    %v1300 = vmul.f32 %v1299, 1.442695
    %v1301 = vpow.pop %v1300
    %v1302 = vadd.f32 %v1301, 1.0
    %v1303 = vrcp.pop %v1302
    %v1304 = vmul.f32 %v1302, %v1303
    %v1305 = vsub.f32 1.0, %v1304
    %v1306 = vmul.f32 %v1303, %v1305
    %v1307 = vadd.f32 %v1303, %v1306
    %vm1308 = vweird.f32 %v1302
    %vm1309 = vweird.f32 %v1303
    %vm1310 = vmor %vm1308, %vm1309
    %v1311 = vsel %vm1310, %v1303, %v1307
    %v1312 = vand.u32 2147483647, %v1302
    %vm1313 = vcmp.eq.f32.partialorder %v1312, 8.507059e+37
    %v1314 = vand.u32 %v1302, 2147483648
    %v1315 = vor.u32 1.1754944e-38, %v1314
    %v1316 = vsel %vm1313, %v1315, %v1311
    %v1317 = vmul.f32 1.0, %v1316
    %v1318 = vmul.f32 %v1317, 2.0
    %v1319 = vsub.f32 %v1318, 1.0
    %1321 = vrot.lane.b32.xlu0 %v1319, 64
    %v1322 = vpop.permute.xlu0 %1321
    %v1324 = vmul.f32 %v1284, %v1322
    %1326 = vrot.lane.b32.xlu0 %v1324, 32
    %v1327 = vpop.permute.xlu0 %1326
    %v1328 = vsel %vm96, %v1327, 0
    %1330 = vmatpush.msra.mxu0 0.0
    %1331 = vmatpush.msra.mxu0 0.0
    %1332 = vmatpush.msra.mxu0 0.0
    %1333 = vmatpush.msra.mxu0 0.0
    %1334 = vmatpush.msra.mxu0 0.0
    %1335 = vmatpush.msra.mxu0 0.0
    %1336 = vmatpush.msra.mxu0 0.0
    %1337 = vmatpush.msra.mxu0 0.0
    %1338 = vmatpush.msra.mxu0 0.0
    %1339 = vmatpush.msra.mxu0 0.0
    %1340 = vmatpush.msra.mxu0 0.0
    %1341 = vmatpush.msra.mxu0 0.0
    %1342 = vmatpush.msra.mxu0 %v74
    %1343 = vmatpush.msra.mxu0 %v73
    %1344 = vmatpush.msra.mxu0 %v72
    %1345 = vmatpush.msra.mxu0 %v71
    %1346 = vmatmul.f32.gmra.mxu0 %v1328
    %v1347 = vpop.f32.mrf.mxu0
    %v1348 = vadd.f32 0.0, %v1347
    %1349 = vdwg.mxu0
    %v1350 = vadd.f32 %v903, %v1348
    %v1351 = vxor.u32 %v1350, 2147483648
    %v1352 = vmul.f32 %v1351, 1.442695
    %v1353 = vpow.pop %v1352
    %v1354 = vadd.f32 %v1353, 1.0
    %v1355 = vrcp.pop %v1354
    %v1356 = vmul.f32 %v1354, %v1355
    %v1357 = vsub.f32 1.0, %v1356
    %v1358 = vmul.f32 %v1355, %v1357
    %v1359 = vadd.f32 %v1355, %v1358
    %vm1360 = vweird.f32 %v1354
    %vm1361 = vweird.f32 %v1355
    %vm1362 = vmor %vm1360, %vm1361
    %v1363 = vsel %vm1362, %v1355, %v1359
    %v1364 = vand.u32 2147483647, %v1354
    %vm1365 = vcmp.eq.f32.partialorder %v1364, 8.507059e+37
    %v1366 = vand.u32 %v1354, 2147483648
    %v1367 = vor.u32 1.1754944e-38, %v1366
    %v1368 = vsel %vm1365, %v1367, %v1363
    %v1369 = vmul.f32 1.0, %v1368
    %v1370 = vmul.f32 %v1369, 2.0
    %v1371 = vsub.f32 %v1370, 1.0
    %v1372 = vmul.f32 %v1369, %v1297
    %1374 = vrot.lane.b32.xlu0 %v1371, 64
    %v1375 = vpop.permute.xlu0 %1374
    %v1377 = vmul.f32 %v1369, %v1375
    %1379 = vrot.lane.b32.xlu0 %v1377, 32
    %v1380 = vpop.permute.xlu0 %1379
    %v1382 = vadd.f32 %v1372, %v1380
    %v1383 = vmul.f32 %v1382, 2.0
    %v1384 = vxor.u32 %v1383, 2147483648
    %v1385 = vmul.f32 %v1384, 1.442695
    %v1386 = vpow.pop %v1385
    %v1387 = vadd.f32 %v1386, 1.0
    %v1388 = vrcp.pop %v1387
    %v1389 = vmul.f32 %v1387, %v1388
    %v1390 = vsub.f32 1.0, %v1389
    %v1391 = vmul.f32 %v1388, %v1390
    %v1392 = vadd.f32 %v1388, %v1391
    %vm1393 = vweird.f32 %v1387
    %vm1394 = vweird.f32 %v1388
    %vm1395 = vmor %vm1393, %vm1394
    %v1396 = vsel %vm1395, %v1388, %v1392
    %v1397 = vand.u32 2147483647, %v1387
    %vm1398 = vcmp.eq.f32.partialorder %v1397, 8.507059e+37
    %v1399 = vand.u32 %v1387, 2147483648
    %v1400 = vor.u32 1.1754944e-38, %v1399
    %v1401 = vsel %vm1398, %v1400, %v1396
    %v1402 = vmul.f32 1.0, %v1401
    %v1403 = vmul.f32 %v1402, 2.0
    %v1404 = vsub.f32 %v1403, 1.0
    %1406 = vrot.lane.b32.xlu0 %v1404, 64
    %v1407 = vpop.permute.xlu0 %1406
    %v1409 = vmul.f32 %v1369, %v1407
    %1411 = vrot.lane.b32.xlu0 %v1409, 32
    %v1412 = vpop.permute.xlu0 %1411
    %v1413 = vsel %vm96, %v1412, 0
    %1415 = vmatpush.msra.mxu0 0.0
    %1416 = vmatpush.msra.mxu0 0.0
    %1417 = vmatpush.msra.mxu0 0.0
    %1418 = vmatpush.msra.mxu0 0.0
    %1419 = vmatpush.msra.mxu0 0.0
    %1420 = vmatpush.msra.mxu0 0.0
    %1421 = vmatpush.msra.mxu0 0.0
    %1422 = vmatpush.msra.mxu0 0.0
    %1423 = vmatpush.msra.mxu0 0.0
    %1424 = vmatpush.msra.mxu0 0.0
    %1425 = vmatpush.msra.mxu0 0.0
    %1426 = vmatpush.msra.mxu0 0.0
    %1427 = vmatpush.msra.mxu0 %v74
    %1428 = vmatpush.msra.mxu0 %v73
    %1429 = vmatpush.msra.mxu0 %v72
    %1430 = vmatpush.msra.mxu0 %v71
    %1431 = vmatmul.f32.gmra.mxu0 %v1413
    %v1432 = vpop.f32.mrf.mxu0
    %v1433 = vadd.f32 0.0, %v1432
    %1434 = vdwg.mxu0
    %v1435 = vadd.f32 %v903, %v1433
    %v1436 = vxor.u32 %v1435, 2147483648
    %v1437 = vmul.f32 %v1436, 1.442695
    %v1438 = vpow.pop %v1437
    %v1439 = vadd.f32 %v1438, 1.0
    %v1440 = vrcp.pop %v1439
    %v1441 = vmul.f32 %v1439, %v1440
    %v1442 = vsub.f32 1.0, %v1441
    %v1443 = vmul.f32 %v1440, %v1442
    %v1444 = vadd.f32 %v1440, %v1443
    %vm1445 = vweird.f32 %v1439
    %vm1446 = vweird.f32 %v1440
    %vm1447 = vmor %vm1445, %vm1446
    %v1448 = vsel %vm1447, %v1440, %v1444
    %v1449 = vand.u32 2147483647, %v1439
    %vm1450 = vcmp.eq.f32.partialorder %v1449, 8.507059e+37
    %v1451 = vand.u32 %v1439, 2147483648
    %v1452 = vor.u32 1.1754944e-38, %v1451
    %v1453 = vsel %vm1450, %v1452, %v1448
    %v1454 = vmul.f32 1.0, %v1453
    %v1455 = vmul.f32 %v1454, 2.0
    %v1456 = vsub.f32 %v1455, 1.0
    %v1457 = vmul.f32 %v1454, %v1382
    %1459 = vrot.lane.b32.xlu0 %v1456, 64
    %v1460 = vpop.permute.xlu0 %1459
    %v1462 = vmul.f32 %v1454, %v1460
    %1464 = vrot.lane.b32.xlu0 %v1462, 32
    %v1465 = vpop.permute.xlu0 %1464
    %v1467 = vadd.f32 %v1457, %v1465
    %v1468 = vmul.f32 %v1467, 2.0
    %v1469 = vxor.u32 %v1468, 2147483648
    %v1470 = vmul.f32 %v1469, 1.442695
    %v1471 = vpow.pop %v1470
    %v1472 = vadd.f32 %v1471, 1.0
    %v1473 = vrcp.pop %v1472
    %v1474 = vmul.f32 %v1472, %v1473
    %v1475 = vsub.f32 1.0, %v1474
    %v1476 = vmul.f32 %v1473, %v1475
    %v1477 = vadd.f32 %v1473, %v1476
    %vm1478 = vweird.f32 %v1472
    %vm1479 = vweird.f32 %v1473
    %vm1480 = vmor %vm1478, %vm1479
    %v1481 = vsel %vm1480, %v1473, %v1477
    %v1482 = vand.u32 2147483647, %v1472
    %vm1483 = vcmp.eq.f32.partialorder %v1482, 8.507059e+37
    %v1484 = vand.u32 %v1472, 2147483648
    %v1485 = vor.u32 1.1754944e-38, %v1484
    %v1486 = vsel %vm1483, %v1485, %v1481
    %v1487 = vmul.f32 1.0, %v1486
    %v1488 = vmul.f32 %v1487, 2.0
    %v1489 = vsub.f32 %v1488, 1.0
    %1491 = vrot.lane.b32.xlu0 %v1489, 64
    %v1492 = vpop.permute.xlu0 %1491
    %v1494 = vmul.f32 %v1454, %v1492
    %1496 = vrot.lane.b32.xlu0 %v1494, 32
    %v1497 = vpop.permute.xlu0 %1496
    %v1498 = vsel %vm96, %v1497, 0
    %1500 = vmatpush.msra.mxu0 0.0
    %1501 = vmatpush.msra.mxu0 0.0
    %1502 = vmatpush.msra.mxu0 0.0
    %1503 = vmatpush.msra.mxu0 0.0
    %1504 = vmatpush.msra.mxu0 0.0
    %1505 = vmatpush.msra.mxu0 0.0
    %1506 = vmatpush.msra.mxu0 0.0
    %1507 = vmatpush.msra.mxu0 0.0
    %1508 = vmatpush.msra.mxu0 0.0
    %1509 = vmatpush.msra.mxu0 0.0
    %1510 = vmatpush.msra.mxu0 0.0
    %1511 = vmatpush.msra.mxu0 0.0
    %1512 = vmatpush.msra.mxu0 %v74
    %1513 = vmatpush.msra.mxu0 %v73
    %1514 = vmatpush.msra.mxu0 %v72
    %1515 = vmatpush.msra.mxu0 %v71
    %1516 = vmatmul.f32.gmra.mxu0 %v1498
    %v1517 = vpop.f32.mrf.mxu0
    %v1518 = vadd.f32 0.0, %v1517
    %1519 = vdwg.mxu0
    %v1520 = vadd.f32 %v903, %v1518
    %v1521 = vxor.u32 %v1520, 2147483648
    %v1522 = vmul.f32 %v1521, 1.442695
    %v1523 = vpow.pop %v1522
    %v1524 = vadd.f32 %v1523, 1.0
    %v1525 = vrcp.pop %v1524
    %v1526 = vmul.f32 %v1524, %v1525
    %v1527 = vsub.f32 1.0, %v1526
    %v1528 = vmul.f32 %v1525, %v1527
    %v1529 = vadd.f32 %v1525, %v1528
    %vm1530 = vweird.f32 %v1524
    %vm1531 = vweird.f32 %v1525
    %vm1532 = vmor %vm1530, %vm1531
    %v1533 = vsel %vm1532, %v1525, %v1529
    %v1534 = vand.u32 2147483647, %v1524
    %vm1535 = vcmp.eq.f32.partialorder %v1534, 8.507059e+37
    %v1536 = vand.u32 %v1524, 2147483648
    %v1537 = vor.u32 1.1754944e-38, %v1536
    %v1538 = vsel %vm1535, %v1537, %v1533
    %v1539 = vmul.f32 1.0, %v1538
    %v1540 = vmul.f32 %v1539, 2.0
    %v1541 = vsub.f32 %v1540, 1.0
    %v1542 = vmul.f32 %v1539, %v1467
    %1544 = vrot.lane.b32.xlu0 %v1541, 64
    %v1545 = vpop.permute.xlu0 %1544
    %v1547 = vmul.f32 %v1539, %v1545
    %1549 = vrot.lane.b32.xlu0 %v1547, 32
    %v1550 = vpop.permute.xlu0 %1549
    %v1552 = vadd.f32 %v1542, %v1550
    %v1553 = vmul.f32 %v1552, 2.0
    %v1554 = vxor.u32 %v1553, 2147483648
    %v1555 = vmul.f32 %v1554, 1.442695
    %v1556 = vpow.pop %v1555
    %v1557 = vadd.f32 %v1556, 1.0
    %v1558 = vrcp.pop %v1557
    %v1559 = vmul.f32 %v1557, %v1558
    %v1560 = vsub.f32 1.0, %v1559
    %v1561 = vmul.f32 %v1558, %v1560
    %v1562 = vadd.f32 %v1558, %v1561
    %vm1563 = vweird.f32 %v1557
    %vm1564 = vweird.f32 %v1558
    %vm1565 = vmor %vm1563, %vm1564
    %v1566 = vsel %vm1565, %v1558, %v1562
    %v1567 = vand.u32 2147483647, %v1557
    %vm1568 = vcmp.eq.f32.partialorder %v1567, 8.507059e+37
    %v1569 = vand.u32 %v1557, 2147483648
    %v1570 = vor.u32 1.1754944e-38, %v1569
    %v1571 = vsel %vm1568, %v1570, %v1566
    %v1572 = vmul.f32 1.0, %v1571
    %v1573 = vmul.f32 %v1572, 2.0
    %v1574 = vsub.f32 %v1573, 1.0
    %1576 = vrot.lane.b32.xlu0 %v1574, 64
    %v1577 = vpop.permute.xlu0 %1576
    %v1579 = vmul.f32 %v1539, %v1577
    %v1580 = vrot.slane %v1069, 7
    %v1582 = vrot.slane %v1154, 6
    %v1584 = vrot.slane %v1239, 5
    %v1586 = vrot.slane %v1324, 4
    %v1588 = vrot.slane %v1409, 3
    %v1590 = vrot.slane %v1494, 2
    %v1593 = vrot.slane %v1579, 1
    %v1595 = vrot.slane %v984, 1
    %v1597 = vrot.slane %v1154, 7
    %v1599 = vrot.slane %v1239, 6
    %v1601 = vrot.slane %v1324, 5
    %v1603 = vrot.slane %v1409, 4
    %v1605 = vrot.slane %v1494, 3
    %v1607 = vrot.slane %v1579, 2
    %v1609 = vsel %vm94, %v984, %v1580
    %vm1610 = vcmask 1041408
    %v1611 = vsel %vm1610, %v1609, %v1582
    %vm1612 = vcmask 1042432
    %v1613 = vsel %vm1612, %v1611, %v1584
    %vm1614 = vcmask 1043456
    %v1615 = vsel %vm1614, %v1613, %v1586
    %vm1616 = vcmask 1044480
    %v1617 = vsel %vm1616, %v1615, %v1588
    %vm1618 = vcmask 1045504
    %v1619 = vsel %vm1618, %v1617, %v1590
    %vm1620 = vcmask 1046528
    %v1621 = vsel %vm1620, %v1619, %v1593
    %v1622 = vsel %vm94, %v1595, %v1069
    %v1623 = vsel %vm1610, %v1622, %v1597
    %v1624 = vsel %vm1612, %v1623, %v1599
    %v1625 = vsel %vm1614, %v1624, %v1601
    %v1626 = vsel %vm1616, %v1625, %v1603
    %v1627 = vsel %vm1618, %v1626, %v1605
    %v1628 = vsel %vm1620, %v1627, %v1607
    %v1629 = vperm.slane %v80, 0
    %1632 = vrot.lane.b32.xlu0 %v1621, 32
    %v1633 = vpop.permute.xlu0 %1632
    %1634 = vrot.lane.b32.xlu0 %v1628, 32
    %v1635 = vpop.permute.xlu0 %1634
    %v1636 = vsel %vm96, %v1633, 0
    %v1638 = vsel %vm96, %v1635, 0
    %1640 = vmatpush.msra.mxu0 0.0
    %1641 = vmatpush.msra.mxu0 0.0
    %1642 = vmatpush.msra.mxu0 0.0
    %1643 = vmatpush.msra.mxu0 0.0
    %1644 = vmatpush.msra.mxu0 0.0
    %1645 = vmatpush.msra.mxu0 0.0
    %1646 = vmatpush.msra.mxu0 0.0
    %1647 = vmatpush.msra.mxu0 0.0
    %1648 = vmatpush.msra.mxu0 0.0
    %1649 = vmatpush.msra.mxu0 0.0
    %1650 = vmatpush.msra.mxu0 0.0
    %1651 = vmatpush.msra.mxu0 0.0
    %1652 = vmatpush.msra.mxu0 %v79
    %1653 = vmatpush.msra.mxu0 %v78
    %1654 = vmatpush.msra.mxu0 %v77
    %1655 = vmatpush.msra.mxu0 %v76
    %1656 = vmatmul.f32.gmra.mxu0 %v1636
    %v1657 = vpop.f32.mrf.mxu0
    %v1658 = vadd.f32 %v1629, %v1657
    %1659 = vmatmul.f32.gmra.mxu0 %v1638
    %v1660 = vpop.f32.mrf.mxu0
    %v1661 = vadd.f32 %v1629, %v1660
    %1662 = vdwg.mxu0
    %1663 = vst [vmem:[#allocation9] sm:$0xff] %v1658
    %1664 = vst [vmem:[#allocation9 + $0x8] sm:$0xff] %v1661
    %v1665 = vperm.slane %v83, 0
    %1666 = vmatpush.msra.mxu0 0.0
    %1667 = vmatpush.msra.mxu0 0.0
    %1668 = vmatpush.msra.mxu0 0.0
    %1669 = vmatpush.msra.mxu0 0.0
    %1670 = vmatpush.msra.mxu0 0.0
    %1671 = vmatpush.msra.mxu0 0.0
    %1672 = vmatpush.msra.mxu0 0.0
    %1673 = vmatpush.msra.mxu0 0.0
    %1674 = vmatpush.msra.mxu0 0.0
    %1675 = vmatpush.msra.mxu0 0.0
    %1676 = vmatpush.msra.mxu0 0.0
    %1677 = vmatpush.msra.mxu0 0.0
    %1678 = vmatpush.msra.mxu0 0.0
    %1679 = vmatpush.msra.mxu0 0.0
    %1680 = vmatpush.msra.mxu0 %v82
    %1681 = vmatpush.msra.mxu0 %v81
    %1682 = vmatmul.f32.gmra.mxu0 %v883
    %v1683 = vpop.f32.mrf.mxu0
    %v1684 = vadd.f32 %v1665, %v1683
    %1685 = vdwg.mxu0
    %1687 = vrot.lane.b32.xlu0 %v869, 16
    %v1688 = vpop.permute.xlu0 %1687
    %1691 = vrot.lane.b32.xlu0 %v1684, 48
    %v1692 = vpop.permute.xlu0 %1691
    %v1694 = vsel %vm881, %v879, %v1688
    %vm1695 = vcmask 392192
    %v1696 = vsel %vm1695, %v1694, %v1692
    %vm1697 = vcmask 457728
    %v1698 = vsel %vm1697, %v1696, 0.0
    %1699 = vst [vmem:[%s4] sm:$0x3] %v1698
    // Predicated region
    $region26: #{guidance_vae_forward.1} parent=1 // pred_check
      _
    $region27: #{guidance_vae_forward.1} parent=1 // pred_check_branch
      %1701 = sbr.rel (0) target = $region29
    $region28: #{guidance_vae_forward.1} parent=1 // pred_region
      %1703 = vsyncadd [#allocation4], 0
      %s1704 = sshll.u32 [#allocation9], 4
      %s1705 = int_to_ptr.vmem [resolvable:$true] %s1704
      %s1706 = sshll.u32 %s3, 4
      %s1707 = int_to_ptr.hbm [resolvable:$true] %s1706
      %1712 = dma.vmem_to_hbm [thread:$0]  %s1705, 256, %s1707, [#allocation4], 128, 128, 8
    $region29: #{guidance_vae_forward.1} parent=1 // pred_fallthru
      _
    // Predicated region
    $region30: #{guidance_vae_forward.1} parent=1 // pred_check
      _
    $region31: #{guidance_vae_forward.1} parent=1 // pred_check_branch
      %1714 = sbr.rel (0) target = $region33
    $region32: #{guidance_vae_forward.1} parent=1 // pred_region
      _
    $region33: #{guidance_vae_forward.1} parent=1 // pred_fallthru
      _
    // Predicated region
    $region34: #{guidance_vae_forward.1} parent=1 // pred_check
      _
    $region35: #{guidance_vae_forward.1} parent=1 // pred_check_branch
      %1716 = sbr.rel (0) target = $region37
    $region36: #{guidance_vae_forward.1} parent=1 // pred_region
      %1718 = dma.done [#allocation4], 256
    $region37: #{guidance_vae_forward.1} parent=1 // pred_fallthru
      _
    // Predicated region
    $region38: #{guidance_vae_forward.1} parent=1 // pred_check
      _
    $region39: #{guidance_vae_forward.1} parent=1 // pred_check_branch
      %1720 = sbr.rel (0) target = $region41
    $region40: #{guidance_vae_forward.1} parent=1 // pred_region
      _
    $region41: #{guidance_vae_forward.1} parent=1 // pred_fallthru
      _
    %1721 = vsyncpa [#allocation3], 1
    %1722 = vsyncpa [#allocation8], 1
    %1723 = vsyncpa [#allocation4], 1
    %1724 = vsyncpa [#allocation5], 1

</llo_original>
